<compile_context>
chip_gen: v6e
topology: v6e:2x2x1
jax: 0.10.0
libtpu: 0.0.40
codegen_flags: <defaults>
</compile_context>

<pallas_src>
import math
import functools

import jax
import jax.numpy as jnp
from jax.experimental import pallas as pl
from jax.experimental.pallas import tpu as pltpu


def mha_kernel(xq_ref, xk_ref, xv_ref, m_ref,
               wq_ref, wk_ref, wv_ref, wo_ref,
               bq_ref, bk_ref, bv_ref, bo_ref,
               out_ref, attn_ref,
               *, num_heads):
    H = num_heads
    TQ, D = xq_ref.shape[1], xq_ref.shape[2]
    Sk = xk_ref.shape[1]
    dk = D // H

    # Fused-head input projections: one full-lane-width MXU matmul each.
    # (Weights pre-transposed host-side; 1/sqrt(d_k) already folded into Wq/bq.)
    q = jnp.dot(xq_ref[0], wq_ref[...], preferred_element_type=jnp.float32) + bq_ref[...]  # (TQ, D)
    k = jnp.dot(xk_ref[0], wk_ref[...], preferred_element_type=jnp.float32) + bk_ref[...]  # (Sk, D)
    v = jnp.dot(xv_ref[0], wv_ref[...], preferred_element_type=jnp.float32) + bv_ref[...]  # (Sk, D)

    # Per-head scores: heads are contiguous d_k-wide lane slices of q / k.
    scores = []
    for h in range(H):
        lo, hi = h * dk, (h + 1) * dk
        scores.append(jnp.einsum('qd,kd->qk', q[:, lo:hi], k[:, lo:hi],
                                 preferred_element_type=jnp.float32))
    s = jnp.stack(scores, axis=0)                                   # (H, TQ, Sk)

    # Mask (head dim 1 or H) broadcasts inside the select — no explicit broadcast_to.
    m = m_ref[0].astype(jnp.int32)                                  # (Hm, TQ, Sk)
    s = jnp.where(m == 0, jnp.float32(-1e12), s)

    # Exact, numerically-stable softmax over the key axis (batched over heads).
    s = s - jnp.max(s, axis=-1, keepdims=True)
    e = jnp.exp(s)
    a = e / jnp.sum(e, axis=-1, keepdims=True)                      # (H, TQ, Sk)

    # TODO(synk): dropout on attention weights is identity here (eval / p=0).
    attn_ref[0] = a.astype(attn_ref.dtype)                          # one batched store

    # Context + output projection, head reduction fused into the accumulator:
    # out = sum_h (a_h @ v_h) @ Wo[h*dk:(h+1)*dk, :]  + bo
    out = jnp.zeros((TQ, D), jnp.float32) + bo_ref[...]
    for h in range(H):
        lo, hi = h * dk, (h + 1) * dk
        ctx_h = jnp.dot(a[h], v[:, lo:hi], preferred_element_type=jnp.float32)      # (TQ, dk)
        out = out + jnp.dot(ctx_h, wo_ref[lo:hi, :], preferred_element_type=jnp.float32)
    out_ref[0] = out.astype(out_ref.dtype)


def prepare_params(params, num_heads):
    """One-time host-side prep.

    PyTorch Linear stores W as (out, in) with y = x @ W.T + b. We pre-transpose
    all weights to (in, out), fold the 1/sqrt(d_k) score scale into Wq/bq, and
    lay every bias out as a lane-dense (1, D) row.
    """
    wq, bq, wk, bk, wv, bv, wo, bo = params
    D = wq.shape[0]
    scale = 1.0 / math.sqrt(D // num_heads)
    return (
        (wq.T * scale).astype(wq.dtype),       # Wq (D, D), scale folded in
        wk.T, wv.T, wo.T,                      # Wk / Wv / Wo (D, D)
        (bq * scale).reshape(1, D).astype(bq.dtype),
        bk.reshape(1, D), bv.reshape(1, D), bo.reshape(1, D),
    )


def _pick_q_tile(sq):
    """Largest query tile <= 128 that divides Sq (caps per-step VMEM)."""
    if sq <= 128:
        return sq
    for tq in range(128, 0, -1):
        if sq % tq == 0:
            return tq
    return sq


def multihead_attention(query, key, value, mask, prepared_params, *, num_heads):
    """query/key/value: (B, S, D) f32; mask: (B, 1|H, Sq, Sk), 0 => masked."""
    B, Sq, D = query.shape
    Sk = key.shape[1]
    H = num_heads
    Hm = mask.shape[1]
    mask = mask.astype(jnp.int8)        # 4x less mask HBM traffic than int32

    wq_t, wk_t, wv_t, wo_t, bq_r, bk_r, bv_r, bo_r = prepared_params

    TQ = _pick_q_tile(Sq)
    n_q = Sq // TQ

    kernel = functools.partial(mha_kernel, num_heads=H)

    w_spec = pl.BlockSpec((D, D), lambda b, qi: (0, 0))
    b_spec = pl.BlockSpec((1, D), lambda b, qi: (0, 0))

    flops = 2 * B * n_q * (TQ * D * D          # q projection
                           + 2 * Sk * D * D    # k / v projections (per q tile)
                           + 2 * TQ * Sk * D   # QK^T + attn@V (all heads)
                           + TQ * D * D)       # output projection
    bytes_accessed = (4 * (2 * B * Sq * D + 2 * B * Sk * D + B * H * Sq * Sk
                           + 4 * D * D + 4 * D)
                      + B * Hm * Sq * Sk)

    out, attn = pl.pallas_call(
        kernel,
        out_shape=(
            jax.ShapeDtypeStruct((B, Sq, D), query.dtype),
            jax.ShapeDtypeStruct((B, H, Sq, Sk), jnp.float32),
        ),
        grid_spec=pltpu.PrefetchScalarGridSpec(
            num_scalar_prefetch=0,
            grid=(B, n_q),
            in_specs=[
                pl.BlockSpec((1, TQ, D), lambda b, qi: (b, qi, 0)),      # query tile
                pl.BlockSpec((1, Sk, D), lambda b, qi: (b, 0, 0)),       # key (const over qi)
                pl.BlockSpec((1, Sk, D), lambda b, qi: (b, 0, 0)),       # value (const over qi)
                pl.BlockSpec((1, Hm, TQ, Sk), lambda b, qi: (b, 0, qi, 0)),
                w_spec, w_spec, w_spec, w_spec,                          # Wq, Wk, Wv, Wo
                b_spec, b_spec, b_spec, b_spec,                          # bq, bk, bv, bo
            ],
            out_specs=[
                pl.BlockSpec((1, TQ, D), lambda b, qi: (b, qi, 0)),
                pl.BlockSpec((1, H, TQ, Sk), lambda b, qi: (b, 0, qi, 0)),
            ],
        ),
        compiler_params=pltpu.CompilerParams(
            dimension_semantics=("parallel", "parallel"),
            vmem_limit_bytes=48 * 1024 * 1024,   # headroom under v7x's 64 MiB VMEM
        ),
        cost_estimate=pl.CostEstimate(
            flops=int(flops),
            transcendentals=int(B * H * Sq * Sk),
            bytes_accessed=int(bytes_accessed),
        ),
    )(query, key, value, mask, wq_t, wk_t, wv_t, wo_t, bq_r, bk_r, bv_r, bo_r)
    return out, attn


def _reference(query, key, value, mask, params, *, num_heads):
    """Pure-JAX reference mirroring PyTorch forward_3d (equal batch dims, eval)."""
    wq, bq, wk, bk, wv, bv, wo, bo = params
    B, Sq, D = query.shape
    Sk = key.shape[1]
    H, d_k = num_heads, D // num_heads

    def lin(x, w, b):
        return x @ w.T + b

    q = lin(query, wq, bq).reshape(B, Sq, H, d_k).transpose(0, 2, 1, 3)
    k = lin(key, wk, bk).reshape(B, Sk, H, d_k).transpose(0, 2, 1, 3)
    v = lin(value, wv, bv).reshape(B, Sk, H, d_k).transpose(0, 2, 1, 3)
    scores = jnp.einsum("bhqd,bhkd->bhqk", q, k) / math.sqrt(d_k)
    scores = jnp.where(mask == 0, -1e12, scores)
    attn = jax.nn.softmax(scores, axis=-1)
    ctx = jnp.einsum("bhqk,bhkd->bhqd", attn, v)
    ctx = ctx.transpose(0, 2, 1, 3).reshape(B, Sq, D)
    out = lin(ctx, wo, bo)
    return out, attn


if __name__ == "__main__":
    B, S, D, H = 2, 8, 32, 4           # batch (img_cap_dim), seq, d_model, heads
    dtype = jnp.float32

    key0 = jax.random.PRNGKey(0)
    ks = jax.random.split(key0, 12)

    # deterministic parameter init (PyTorch Linear shapes: W (out,in), b (out,))
    def w_init(k):  return jax.random.normal(k, (D, D), dtype) * 0.05
    def b_init(k):  return jax.random.normal(k, (D,), dtype) * 0.01

    params = (w_init(ks[0]), b_init(ks[1]),
              w_init(ks[2]), b_init(ks[3]),
              w_init(ks[4]), b_init(ks[5]),
              w_init(ks[6]), b_init(ks[7]))

    query = jax.random.normal(ks[8],  (B, S, D), dtype)
    key   = jax.random.normal(ks[9],  (B, S, D), dtype)
    value = jax.random.normal(ks[10], (B, S, D), dtype)

    # deterministic causal mask, compressed to (B, 1, Sq, Sk) — broadcast over heads
    causal = (jnp.arange(S)[:, None] >= jnp.arange(S)[None, :]).astype(jnp.int32)
    mask = jnp.broadcast_to(causal, (B, 1, S, S))

    prepared = prepare_params(params, H)         # one-time host-side layout prep

    out, attn = multihead_attention(query, key, value, mask, prepared, num_heads=H)
    out = jax.block_until_ready(out)
    attn = jax.block_until_ready(attn)

    ref_out, ref_attn = _reference(query, key, value, mask, params, num_heads=H)
    assert jnp.allclose(out, ref_out, atol=1e-4, rtol=1e-4), "output mismatch"
    assert jnp.allclose(attn, ref_attn, atol=1e-4, rtol=1e-4), "attn mismatch"

    print("KERNEL_OK")
</pallas_src>

<mosaic_0001>
module attributes {stable_mosaic.version = 11 : i64} {
  func.func @mha_kernel(%arg0: i32, %arg1: i32, %arg2: memref<1x8x32xf32, #tpu.memory_space<vmem>>, %arg3: memref<1x8x32xf32, #tpu.memory_space<vmem>>, %arg4: memref<1x8x32xf32, #tpu.memory_space<vmem>>, %arg5: memref<1x1x8x8xi8, #tpu.memory_space<vmem>>, %arg6: memref<32x32xf32, #tpu.memory_space<vmem>>, %arg7: memref<32x32xf32, #tpu.memory_space<vmem>>, %arg8: memref<32x32xf32, #tpu.memory_space<vmem>>, %arg9: memref<32x32xf32, #tpu.memory_space<vmem>>, %arg10: memref<1x32xf32, #tpu.memory_space<vmem>>, %arg11: memref<1x32xf32, #tpu.memory_space<vmem>>, %arg12: memref<1x32xf32, #tpu.memory_space<vmem>>, %arg13: memref<1x32xf32, #tpu.memory_space<vmem>>, %arg14: memref<1x8x32xf32, #tpu.memory_space<vmem>>, %arg15: memref<1x4x8x8xf32, #tpu.memory_space<vmem>>) attributes {dimension_semantics = [#tpu.dimension_semantics<parallel>, #tpu.dimension_semantics<parallel>], iteration_bounds = array<i64: 2, 1>, scalar_prefetch = 0 : i64, scratch_operands = 0 : i64, tpu.core_type = #tpu.core_type<tc>, window_params = [{transform_indices = @transform_0, window_bounds = array<i64: 1, 8, 32>}, {transform_indices = @transform_1, window_bounds = array<i64: 1, 8, 32>}, {transform_indices = @transform_2, window_bounds = array<i64: 1, 8, 32>}, {transform_indices = @transform_3, window_bounds = array<i64: 1, 1, 8, 8>}, {pipeline_mode = #tpu.pipeline_mode<synchronous>, transform_indices = @transform_4, window_bounds = array<i64: 32, 32>}, {pipeline_mode = #tpu.pipeline_mode<synchronous>, transform_indices = @transform_5, window_bounds = array<i64: 32, 32>}, {pipeline_mode = #tpu.pipeline_mode<synchronous>, transform_indices = @transform_6, window_bounds = array<i64: 32, 32>}, {pipeline_mode = #tpu.pipeline_mode<synchronous>, transform_indices = @transform_7, window_bounds = array<i64: 32, 32>}, {pipeline_mode = #tpu.pipeline_mode<synchronous>, transform_indices = @transform_8, window_bounds = array<i64: 1, 32>}, {pipeline_mode = #tpu.pipeline_mode<synchronous>, transform_indices = @transform_9, window_bounds = array<i64: 1, 32>}, {pipeline_mode = #tpu.pipeline_mode<synchronous>, transform_indices = @transform_10, window_bounds = array<i64: 1, 32>}, {pipeline_mode = #tpu.pipeline_mode<synchronous>, transform_indices = @transform_11, window_bounds = array<i64: 1, 32>}, {transform_indices = @transform_12, window_bounds = array<i64: 1, 8, 32>}, {transform_indices = @transform_13, window_bounds = array<i64: 1, 4, 8, 8>}]} {
    %c0 = arith.constant 0 : index
    %c0_0 = arith.constant 0 : index
    %c0_1 = arith.constant 0 : index
    %0 = vector.load %arg2[%c0, %c0_0, %c0_1] : memref<1x8x32xf32, #tpu.memory_space<vmem>>, vector<1x8x32xf32>
    %1 = vector.shape_cast %0 : vector<1x8x32xf32> to vector<8x32xf32>
    %c0_2 = arith.constant 0 : index
    %c0_3 = arith.constant 0 : index
    %2 = vector.load %arg6[%c0_2, %c0_3] : memref<32x32xf32, #tpu.memory_space<vmem>>, vector<32x32xf32>
    %cst = arith.constant dense<0.000000e+00> : vector<8x32xf32>
    %3 = tpu.matmul %1, %2, %cst {dimension_numbers = #tpu.dot_dimension_numbers<[1], [0], [0], [1], [0, 0, 1, 1], [], []>} : vector<8x32xf32>, vector<32x32xf32>, vector<8x32xf32> -> vector<8x32xf32>
    %c0_4 = arith.constant 0 : index
    %c0_5 = arith.constant 0 : index
    %4 = vector.load %arg10[%c0_4, %c0_5] : memref<1x32xf32, #tpu.memory_space<vmem>>, vector<1x32xf32>
    %5 = vector.broadcast %4 : vector<1x32xf32> to vector<8x32xf32>
    %6 = arith.addf %3, %5 : vector<8x32xf32>
    %c0_6 = arith.constant 0 : index
    %c0_7 = arith.constant 0 : index
    %c0_8 = arith.constant 0 : index
    %7 = vector.load %arg3[%c0_6, %c0_7, %c0_8] : memref<1x8x32xf32, #tpu.memory_space<vmem>>, vector<1x8x32xf32>
    %8 = vector.shape_cast %7 : vector<1x8x32xf32> to vector<8x32xf32>
    %c0_9 = arith.constant 0 : index
    %c0_10 = arith.constant 0 : index
    %9 = vector.load %arg7[%c0_9, %c0_10] : memref<32x32xf32, #tpu.memory_space<vmem>>, vector<32x32xf32>
    %cst_11 = arith.constant dense<0.000000e+00> : vector<8x32xf32>
    %10 = tpu.matmul %8, %9, %cst_11 {dimension_numbers = #tpu.dot_dimension_numbers<[1], [0], [0], [1], [0, 0, 1, 1], [], []>} : vector<8x32xf32>, vector<32x32xf32>, vector<8x32xf32> -> vector<8x32xf32>
    %c0_12 = arith.constant 0 : index
    %c0_13 = arith.constant 0 : index
    %11 = vector.load %arg11[%c0_12, %c0_13] : memref<1x32xf32, #tpu.memory_space<vmem>>, vector<1x32xf32>
    %12 = vector.broadcast %11 : vector<1x32xf32> to vector<8x32xf32>
    %13 = arith.addf %10, %12 : vector<8x32xf32>
    %c0_14 = arith.constant 0 : index
    %c0_15 = arith.constant 0 : index
    %c0_16 = arith.constant 0 : index
    %14 = vector.load %arg4[%c0_14, %c0_15, %c0_16] : memref<1x8x32xf32, #tpu.memory_space<vmem>>, vector<1x8x32xf32>
    %15 = vector.shape_cast %14 : vector<1x8x32xf32> to vector<8x32xf32>
    %c0_17 = arith.constant 0 : index
    %c0_18 = arith.constant 0 : index
    %16 = vector.load %arg8[%c0_17, %c0_18] : memref<32x32xf32, #tpu.memory_space<vmem>>, vector<32x32xf32>
    %cst_19 = arith.constant dense<0.000000e+00> : vector<8x32xf32>
    %17 = tpu.matmul %15, %16, %cst_19 {dimension_numbers = #tpu.dot_dimension_numbers<[1], [0], [0], [1], [0, 0, 1, 1], [], []>} : vector<8x32xf32>, vector<32x32xf32>, vector<8x32xf32> -> vector<8x32xf32>
    %c0_20 = arith.constant 0 : index
    %c0_21 = arith.constant 0 : index
    %18 = vector.load %arg12[%c0_20, %c0_21] : memref<1x32xf32, #tpu.memory_space<vmem>>, vector<1x32xf32>
    %19 = vector.broadcast %18 : vector<1x32xf32> to vector<8x32xf32>
    %20 = arith.addf %17, %19 : vector<8x32xf32>
    %21 = vector.extract_strided_slice %6 {offsets = [0, 0], sizes = [8, 8], strides = [1, 1]} : vector<8x32xf32> to vector<8x8xf32>
    %22 = vector.extract_strided_slice %13 {offsets = [0, 0], sizes = [8, 8], strides = [1, 1]} : vector<8x32xf32> to vector<8x8xf32>
    "tpu.trace_start"() <{level = 10 : i32, message = "qd,kd->qk"}> : () -> ()
    %cst_22 = arith.constant dense<0.000000e+00> : vector<8x8xf32>
    %23 = tpu.matmul %21, %22, %cst_22 {dimension_numbers = #tpu.dot_dimension_numbers<[1], [1], [0], [0], [0, 0, 1, 0], [], []>} : vector<8x8xf32>, vector<8x8xf32>, vector<8x8xf32> -> vector<8x8xf32>
    "tpu.trace_stop"() : () -> ()
    %24 = vector.extract_strided_slice %6 {offsets = [0, 8], sizes = [8, 8], strides = [1, 1]} : vector<8x32xf32> to vector<8x8xf32>
    %25 = vector.extract_strided_slice %13 {offsets = [0, 8], sizes = [8, 8], strides = [1, 1]} : vector<8x32xf32> to vector<8x8xf32>
    "tpu.trace_start"() <{level = 10 : i32, message = "qd,kd->qk"}> : () -> ()
    %cst_23 = arith.constant dense<0.000000e+00> : vector<8x8xf32>
    %26 = tpu.matmul %24, %25, %cst_23 {dimension_numbers = #tpu.dot_dimension_numbers<[1], [1], [0], [0], [0, 0, 1, 0], [], []>} : vector<8x8xf32>, vector<8x8xf32>, vector<8x8xf32> -> vector<8x8xf32>
    "tpu.trace_stop"() : () -> ()
    %27 = vector.extract_strided_slice %6 {offsets = [0, 16], sizes = [8, 8], strides = [1, 1]} : vector<8x32xf32> to vector<8x8xf32>
    %28 = vector.extract_strided_slice %13 {offsets = [0, 16], sizes = [8, 8], strides = [1, 1]} : vector<8x32xf32> to vector<8x8xf32>
    "tpu.trace_start"() <{level = 10 : i32, message = "qd,kd->qk"}> : () -> ()
    %cst_24 = arith.constant dense<0.000000e+00> : vector<8x8xf32>
    %29 = tpu.matmul %27, %28, %cst_24 {dimension_numbers = #tpu.dot_dimension_numbers<[1], [1], [0], [0], [0, 0, 1, 0], [], []>} : vector<8x8xf32>, vector<8x8xf32>, vector<8x8xf32> -> vector<8x8xf32>
    "tpu.trace_stop"() : () -> ()
    %30 = vector.extract_strided_slice %6 {offsets = [0, 24], sizes = [8, 8], strides = [1, 1]} : vector<8x32xf32> to vector<8x8xf32>
    %31 = vector.extract_strided_slice %13 {offsets = [0, 24], sizes = [8, 8], strides = [1, 1]} : vector<8x32xf32> to vector<8x8xf32>
    "tpu.trace_start"() <{level = 10 : i32, message = "qd,kd->qk"}> : () -> ()
    %cst_25 = arith.constant dense<0.000000e+00> : vector<8x8xf32>
    %32 = tpu.matmul %30, %31, %cst_25 {dimension_numbers = #tpu.dot_dimension_numbers<[1], [1], [0], [0], [0, 0, 1, 0], [], []>} : vector<8x8xf32>, vector<8x8xf32>, vector<8x8xf32> -> vector<8x8xf32>
    "tpu.trace_stop"() : () -> ()
    %33 = vector.shape_cast %23 : vector<8x8xf32> to vector<1x8x8xf32>
    %34 = vector.shape_cast %26 : vector<8x8xf32> to vector<1x8x8xf32>
    %35 = vector.shape_cast %29 : vector<8x8xf32> to vector<1x8x8xf32>
    %36 = vector.shape_cast %32 : vector<8x8xf32> to vector<1x8x8xf32>
    %37 = tpu.concatenate %33, %34, %35, %36 in 0 : vector<1x8x8xf32>, vector<1x8x8xf32>, vector<1x8x8xf32>, vector<1x8x8xf32> -> vector<4x8x8xf32>
    %c0_26 = arith.constant 0 : index
    %c0_27 = arith.constant 0 : index
    %c0_28 = arith.constant 0 : index
    %c0_29 = arith.constant 0 : index
    %38 = vector.load %arg5[%c0_26, %c0_27, %c0_28, %c0_29] : memref<1x1x8x8xi8, #tpu.memory_space<vmem>>, vector<1x1x8x8xi8>
    %39 = vector.shape_cast %38 : vector<1x1x8x8xi8> to vector<1x8x8xi8>
    %40 = arith.extsi %39 : vector<1x8x8xi8> to vector<1x8x8xi32>
    %c0_i32 = arith.constant 0 : i32
    %41 = vector.broadcast %c0_i32 : i32 to vector<1x8x8xi32>
    %42 = arith.cmpi eq, %40, %41 : vector<1x8x8xi32>
    %cst_30 = arith.constant -9.99999995E+11 : f32
    %43 = vector.shape_cast %42 : vector<1x8x8xi1> to vector<1x8x8xi1>
    %44 = vector.broadcast %43 : vector<1x8x8xi1> to vector<4x8x8xi1>
    %45 = vector.broadcast %cst_30 : f32 to vector<4x8x8xf32>
    %46 = arith.select %44, %45, %37 : vector<4x8x8xi1>, vector<4x8x8xf32>
    %cst_31 = arith.constant dense<0xFF800000> : vector<4x8xf32>
    %47 = vector.multi_reduction <maximumf>, %46, %cst_31 [2] : vector<4x8x8xf32> to vector<4x8xf32>
    %48 = vector.shape_cast %47 : vector<4x8xf32> to vector<4x8x1xf32>
    %49 = vector.broadcast %48 : vector<4x8x1xf32> to vector<4x8x8xf32>
    %50 = arith.subf %46, %49 : vector<4x8x8xf32>
    %51 = math.exp %50 : vector<4x8x8xf32>
    %cst_32 = arith.constant dense<0.000000e+00> : vector<4x8xf32>
    %52 = vector.multi_reduction <add>, %51, %cst_32 [2] : vector<4x8x8xf32> to vector<4x8xf32>
    %53 = vector.shape_cast %52 : vector<4x8xf32> to vector<4x8x1xf32>
    %54 = vector.broadcast %53 : vector<4x8x1xf32> to vector<4x8x8xf32>
    %55 = arith.divf %51, %54 : vector<4x8x8xf32>
    %c0_33 = arith.constant 0 : index
    %c0_34 = arith.constant 0 : index
    %c0_35 = arith.constant 0 : index
    %c0_36 = arith.constant 0 : index
    %56 = vector.load %arg15[%c0_33, %c0_34, %c0_35, %c0_36] : memref<1x4x8x8xf32, #tpu.memory_space<vmem>>, vector<1x4x8x8xf32>
    %57 = vector.shape_cast %56 : vector<1x4x8x8xf32> to vector<4x8x8xf32>
    %58 = vector.shape_cast %55 : vector<4x8x8xf32> to vector<1x4x8x8xf32>
    tpu.vector_store %arg15[%c0_33, %c0_34, %c0_35, %c0_36], %58 {strides = array<i32>} : memref<1x4x8x8xf32, #tpu.memory_space<vmem>>, vector<1x4x8x8xf32>,
    %cst_37 = arith.constant 0.000000e+00 : f32
    %59 = vector.broadcast %cst_37 : f32 to vector<8x32xf32>
    %c0_38 = arith.constant 0 : index
    %c0_39 = arith.constant 0 : index
    %60 = vector.load %arg13[%c0_38, %c0_39] : memref<1x32xf32, #tpu.memory_space<vmem>>, vector<1x32xf32>
    %61 = vector.broadcast %60 : vector<1x32xf32> to vector<8x32xf32>
    %62 = arith.addf %59, %61 : vector<8x32xf32>
    %63 = vector.extract_strided_slice %55 {offsets = [0, 0, 0], sizes = [1, 8, 8], strides = [1, 1, 1]} : vector<4x8x8xf32> to vector<1x8x8xf32>
    %64 = vector.shape_cast %63 : vector<1x8x8xf32> to vector<8x8xf32>
    %65 = vector.extract_strided_slice %20 {offsets = [0, 0], sizes = [8, 8], strides = [1, 1]} : vector<8x32xf32> to vector<8x8xf32>
    %cst_40 = arith.constant dense<0.000000e+00> : vector<8x8xf32>
    %66 = tpu.matmul %64, %65, %cst_40 {dimension_numbers = #tpu.dot_dimension_numbers<[1], [0], [0], [1], [0, 0, 1, 1], [], []>} : vector<8x8xf32>, vector<8x8xf32>, vector<8x8xf32> -> vector<8x8xf32>
    %c0_41 = arith.constant 0 : index
    %c0_42 = arith.constant 0 : index
    %67 = vector.load %arg9[%c0_41, %c0_42] : memref<32x32xf32, #tpu.memory_space<vmem>>, vector<8x32xf32>
    %cst_43 = arith.constant dense<0.000000e+00> : vector<8x32xf32>
    %68 = tpu.matmul %66, %67, %cst_43 {dimension_numbers = #tpu.dot_dimension_numbers<[1], [0], [0], [1], [0, 0, 1, 1], [], []>} : vector<8x8xf32>, vector<8x32xf32>, vector<8x32xf32> -> vector<8x32xf32>
    %69 = arith.addf %62, %68 : vector<8x32xf32>
    %70 = vector.extract_strided_slice %55 {offsets = [1, 0, 0], sizes = [1, 8, 8], strides = [1, 1, 1]} : vector<4x8x8xf32> to vector<1x8x8xf32>
    %71 = vector.shape_cast %70 : vector<1x8x8xf32> to vector<8x8xf32>
    %72 = vector.extract_strided_slice %20 {offsets = [0, 8], sizes = [8, 8], strides = [1, 1]} : vector<8x32xf32> to vector<8x8xf32>
    %cst_44 = arith.constant dense<0.000000e+00> : vector<8x8xf32>
    %73 = tpu.matmul %71, %72, %cst_44 {dimension_numbers = #tpu.dot_dimension_numbers<[1], [0], [0], [1], [0, 0, 1, 1], [], []>} : vector<8x8xf32>, vector<8x8xf32>, vector<8x8xf32> -> vector<8x8xf32>
    %c8 = arith.constant 8 : index
    %c0_45 = arith.constant 0 : index
    %74 = vector.load %arg9[%c8, %c0_45] : memref<32x32xf32, #tpu.memory_space<vmem>>, vector<8x32xf32>
    %cst_46 = arith.constant dense<0.000000e+00> : vector<8x32xf32>
    %75 = tpu.matmul %73, %74, %cst_46 {dimension_numbers = #tpu.dot_dimension_numbers<[1], [0], [0], [1], [0, 0, 1, 1], [], []>} : vector<8x8xf32>, vector<8x32xf32>, vector<8x32xf32> -> vector<8x32xf32>
    %76 = arith.addf %69, %75 : vector<8x32xf32>
    %77 = vector.extract_strided_slice %55 {offsets = [2, 0, 0], sizes = [1, 8, 8], strides = [1, 1, 1]} : vector<4x8x8xf32> to vector<1x8x8xf32>
    %78 = vector.shape_cast %77 : vector<1x8x8xf32> to vector<8x8xf32>
    %79 = vector.extract_strided_slice %20 {offsets = [0, 16], sizes = [8, 8], strides = [1, 1]} : vector<8x32xf32> to vector<8x8xf32>
    %cst_47 = arith.constant dense<0.000000e+00> : vector<8x8xf32>
    %80 = tpu.matmul %78, %79, %cst_47 {dimension_numbers = #tpu.dot_dimension_numbers<[1], [0], [0], [1], [0, 0, 1, 1], [], []>} : vector<8x8xf32>, vector<8x8xf32>, vector<8x8xf32> -> vector<8x8xf32>
    %c16 = arith.constant 16 : index
    %c0_48 = arith.constant 0 : index
    %81 = vector.load %arg9[%c16, %c0_48] : memref<32x32xf32, #tpu.memory_space<vmem>>, vector<8x32xf32>
    %cst_49 = arith.constant dense<0.000000e+00> : vector<8x32xf32>
    %82 = tpu.matmul %80, %81, %cst_49 {dimension_numbers = #tpu.dot_dimension_numbers<[1], [0], [0], [1], [0, 0, 1, 1], [], []>} : vector<8x8xf32>, vector<8x32xf32>, vector<8x32xf32> -> vector<8x32xf32>
    %83 = arith.addf %76, %82 : vector<8x32xf32>
    %84 = vector.extract_strided_slice %55 {offsets = [3, 0, 0], sizes = [1, 8, 8], strides = [1, 1, 1]} : vector<4x8x8xf32> to vector<1x8x8xf32>
    %85 = vector.shape_cast %84 : vector<1x8x8xf32> to vector<8x8xf32>
    %86 = vector.extract_strided_slice %20 {offsets = [0, 24], sizes = [8, 8], strides = [1, 1]} : vector<8x32xf32> to vector<8x8xf32>
    %cst_50 = arith.constant dense<0.000000e+00> : vector<8x8xf32>
    %87 = tpu.matmul %85, %86, %cst_50 {dimension_numbers = #tpu.dot_dimension_numbers<[1], [0], [0], [1], [0, 0, 1, 1], [], []>} : vector<8x8xf32>, vector<8x8xf32>, vector<8x8xf32> -> vector<8x8xf32>
    %c24 = arith.constant 24 : index
    %c0_51 = arith.constant 0 : index
    %88 = vector.load %arg9[%c24, %c0_51] : memref<32x32xf32, #tpu.memory_space<vmem>>, vector<8x32xf32>
    %cst_52 = arith.constant dense<0.000000e+00> : vector<8x32xf32>
    %89 = tpu.matmul %87, %88, %cst_52 {dimension_numbers = #tpu.dot_dimension_numbers<[1], [0], [0], [1], [0, 0, 1, 1], [], []>} : vector<8x8xf32>, vector<8x32xf32>, vector<8x32xf32> -> vector<8x32xf32>
    %90 = arith.addf %83, %89 : vector<8x32xf32>
    %c0_53 = arith.constant 0 : index
    %c0_54 = arith.constant 0 : index
    %c0_55 = arith.constant 0 : index
    %91 = vector.load %arg14[%c0_53, %c0_54, %c0_55] : memref<1x8x32xf32, #tpu.memory_space<vmem>>, vector<1x8x32xf32>
    %92 = vector.shape_cast %91 : vector<1x8x32xf32> to vector<8x32xf32>
    %93 = vector.shape_cast %90 : vector<8x32xf32> to vector<1x8x32xf32>
    tpu.vector_store %arg14[%c0_53, %c0_54, %c0_55], %93 {strides = array<i32>} : memref<1x8x32xf32, #tpu.memory_space<vmem>>, vector<1x8x32xf32>,
    return
  }
  func.func @transform_0(%arg0: i32, %arg1: i32) -> (i32, i32, i32) {
    %c0_i32 = arith.constant 0 : i32
    %c0_i32_0 = arith.constant 0 : i32
    return %arg0, %arg1, %c0_i32 : i32, i32, i32
  }
  func.func @transform_1(%arg0: i32, %arg1: i32) -> (i32, i32, i32) {
    %c0_i32 = arith.constant 0 : i32
    %c0_i32_0 = arith.constant 0 : i32
    %c0_i32_1 = arith.constant 0 : i32
    return %arg0, %c0_i32, %c0_i32_0 : i32, i32, i32
  }
  func.func @transform_2(%arg0: i32, %arg1: i32) -> (i32, i32, i32) {
    %c0_i32 = arith.constant 0 : i32
    %c0_i32_0 = arith.constant 0 : i32
    %c0_i32_1 = arith.constant 0 : i32
    return %arg0, %c0_i32, %c0_i32_0 : i32, i32, i32
  }
  func.func @transform_3(%arg0: i32, %arg1: i32) -> (i32, i32, i32, i32) {
    %c0_i32 = arith.constant 0 : i32
    %c0_i32_0 = arith.constant 0 : i32
    %c0_i32_1 = arith.constant 0 : i32
    return %arg0, %c0_i32, %arg1, %c0_i32_0 : i32, i32, i32, i32
  }
  func.func @transform_4(%arg0: i32, %arg1: i32) -> (i32, i32) {
    %c0_i32 = arith.constant 0 : i32
    %c0_i32_0 = arith.constant 0 : i32
    %c0_i32_1 = arith.constant 0 : i32
    return %c0_i32, %c0_i32_0 : i32, i32
  }
  func.func @transform_5(%arg0: i32, %arg1: i32) -> (i32, i32) {
    %c0_i32 = arith.constant 0 : i32
    %c0_i32_0 = arith.constant 0 : i32
    %c0_i32_1 = arith.constant 0 : i32
    return %c0_i32, %c0_i32_0 : i32, i32
  }
  func.func @transform_6(%arg0: i32, %arg1: i32) -> (i32, i32) {
    %c0_i32 = arith.constant 0 : i32
    %c0_i32_0 = arith.constant 0 : i32
    %c0_i32_1 = arith.constant 0 : i32
    return %c0_i32, %c0_i32_0 : i32, i32
  }
  func.func @transform_7(%arg0: i32, %arg1: i32) -> (i32, i32) {
    %c0_i32 = arith.constant 0 : i32
    %c0_i32_0 = arith.constant 0 : i32
    %c0_i32_1 = arith.constant 0 : i32
    return %c0_i32, %c0_i32_0 : i32, i32
  }
  func.func @transform_8(%arg0: i32, %arg1: i32) -> (i32, i32) {
    %c0_i32 = arith.constant 0 : i32
    %c0_i32_0 = arith.constant 0 : i32
    %c0_i32_1 = arith.constant 0 : i32
    return %c0_i32, %c0_i32_0 : i32, i32
  }
  func.func @transform_9(%arg0: i32, %arg1: i32) -> (i32, i32) {
    %c0_i32 = arith.constant 0 : i32
    %c0_i32_0 = arith.constant 0 : i32
    %c0_i32_1 = arith.constant 0 : i32
    return %c0_i32, %c0_i32_0 : i32, i32
  }
  func.func @transform_10(%arg0: i32, %arg1: i32) -> (i32, i32) {
    %c0_i32 = arith.constant 0 : i32
    %c0_i32_0 = arith.constant 0 : i32
    %c0_i32_1 = arith.constant 0 : i32
    return %c0_i32, %c0_i32_0 : i32, i32
  }
  func.func @transform_11(%arg0: i32, %arg1: i32) -> (i32, i32) {
    %c0_i32 = arith.constant 0 : i32
    %c0_i32_0 = arith.constant 0 : i32
    %c0_i32_1 = arith.constant 0 : i32
    return %c0_i32, %c0_i32_0 : i32, i32
  }
  func.func @transform_12(%arg0: i32, %arg1: i32) -> (i32, i32, i32) {
    %c0_i32 = arith.constant 0 : i32
    %c0_i32_0 = arith.constant 0 : i32
    return %arg0, %arg1, %c0_i32 : i32, i32, i32
  }
  func.func @transform_13(%arg0: i32, %arg1: i32) -> (i32, i32, i32, i32) {
    %c0_i32 = arith.constant 0 : i32
    %c0_i32_0 = arith.constant 0 : i32
    %c0_i32_1 = arith.constant 0 : i32
    return %arg0, %c0_i32, %arg1, %c0_i32_0 : i32, i32, i32, i32
  }
}

</mosaic_0001>

<llo_original>
// kernel: tpu_custom_call.1
$region0: #{tpu_custom_call.1}
  #allocation0 [shape = 'u32[]', space=smem, size = 0x4, offset = 0x4, fixed_abs, tag = 'smem constant byte address 0x4 - core index']
  #allocation1 [shape = 'u32[144,128]{1,0:T(1,128)}', space=vmem, size = 0x12000, scoped, tag = 'internal scratch']
  %s0 = inlined_call_operand.hbm [shape: f32[2,8,32], index: 0, kind: input, shape index: {}]
  %s1 = inlined_call_operand.hbm [shape: f32[2,8,32], index: 1, kind: input, shape index: {}]
  %s2 = inlined_call_operand.hbm [shape: f32[2,8,32], index: 2, kind: input, shape index: {}]
  %s3 = inlined_call_operand.vmem [shape: s8[2,1,8,8], index: 3, kind: input, shape index: {}]
  %s4 = inlined_call_operand.hbm [shape: f32[32,32], index: 4, kind: input, shape index: {}]
  %s5 = inlined_call_operand.hbm [shape: f32[32,32], index: 5, kind: input, shape index: {}]
  %s6 = inlined_call_operand.hbm [shape: f32[32,32], index: 6, kind: input, shape index: {}]
  %s7 = inlined_call_operand.hbm [shape: f32[32,32], index: 7, kind: input, shape index: {}]
  %s8 = inlined_call_operand.vmem [shape: f32[1,32], index: 8, kind: input, shape index: {}]
  %s9 = inlined_call_operand.vmem [shape: f32[1,32], index: 9, kind: input, shape index: {}]
  %s10 = inlined_call_operand.vmem [shape: f32[1,32], index: 10, kind: input, shape index: {}]
  %s11 = inlined_call_operand.vmem [shape: f32[1,32], index: 11, kind: input, shape index: {}]
  %s12 = inlined_call_operand.hbm [shape: f32[2,8,32], index: 12, kind: output, shape index: {0}]
  %s13 = inlined_call_operand.hbm [shape: f32[2,4,8,8], index: 13, kind: output, shape index: {1}]
  %14 = xla_tuple %s12, %s13
  %s15 = sld [smem:[#allocation0]]
  $region117: #{tpu_custom_call.1} parent=0
    _
  %s17 = ssub.s32 1, %s15
  %s18 = scalar_select 0, %s17, %s15
  $region1: #{tpu_custom_call.1} parent=0
    #allocation2 [shape = 'u8[8192]{0}', space=vmem, size = 0x2000, scoped, tag = 'input window, operand 0']
    #allocation3 [shape = 's32[2]{0}', space=sflag, size = 0x8, scoped, tag = 'scoped memory for tpu_custom_call.1']
    #allocation4 [shape = 's32[2]{0}', space=sflag, size = 0x8, scoped, tag = 'scoped memory for tpu_custom_call.1']
    #allocation5 [shape = 'u8[8192]{0}', space=vmem, size = 0x2000, scoped, tag = 'input window, operand 1']
    #allocation6 [shape = 's32[2]{0}', space=sflag, size = 0x8, scoped, tag = 'scoped memory for tpu_custom_call.1']
    #allocation7 [shape = 'u8[8192]{0}', space=vmem, size = 0x2000, scoped, tag = 'input window, operand 2']
    #allocation8 [shape = 'u8[16384]{0}', space=vmem, size = 0x4000, scoped, tag = 'input window, operand 4, single buffered']
    #allocation9 [shape = 's32[1]{0}', space=sflag, size = 0x4, scoped, tag = 'scoped memory for tpu_custom_call.1']
    #allocation10 [shape = 'u8[16384]{0}', space=vmem, size = 0x4000, scoped, tag = 'input window, operand 5, single buffered']
    #allocation11 [shape = 'u8[16384]{0}', space=vmem, size = 0x4000, scoped, tag = 'input window, operand 6, single buffered']
    #allocation12 [shape = 's32[1]{0}', space=sflag, size = 0x4, scoped, tag = 'scoped memory for tpu_custom_call.1']
    #allocation13 [shape = 'u8[16384]{0}', space=vmem, size = 0x4000, scoped, tag = 'input window, operand 7, single buffered']
    #allocation14 [shape = 'u8[8192]{0}', space=vmem, size = 0x2000, scoped, tag = 'output window, operand 0']
    #allocation15 [shape = 'u8[32768]{0}', space=vmem, size = 0x8000, scoped, tag = 'output window, operand 1']
    #allocation16 [shape = 's32[2]{0}', space=sflag, size = 0x8, scoped, tag = 'scoped memory for tpu_custom_call.1']
    %19 = vsyncpa [#allocation3], 0
    %s20 = scalar_lea.sflag [#allocation3], 1
    %21 = vsyncpa %s20, 0
    %22 = vsyncpa [#allocation6], 0
    %s23 = scalar_lea.sflag [#allocation6], 1
    %24 = vsyncpa %s23, 0
    %25 = vsyncpa [#allocation9], 0
    %26 = vsyncpa [#allocation12], 0
    %27 = vsyncpa [#allocation4], 0
    %s28 = scalar_lea.sflag [#allocation4], 1
    %29 = vsyncpa %s28, 0
    %30 = vsyncpa [#allocation16], 0
    %s31 = scalar_lea.sflag [#allocation16], 1
    %32 = vsyncpa %s31, 0
    loop: start=0, step=1, limit=4
    $region2: #{tpu_custom_call.1} parent=1 // loop_pre_header
      _
    $region3: #{tpu_custom_call.1} parent=1 // loop_header
      %s34 = sphi 0, %s38
      %p35 = scmp.ge.s32.totalorder %s34, 4
      %s41 = sphi 0, %s53
      %s42 = sphi 0, %s49
      %s43 = sphi 0, %s41
      %s44 = sphi 0, %s42
      %s45 = sphi 0, %s43
      %s46 = sphi 0, %s44
      %s58 = sphi 0, %s60
      %s61 = sphi 0, %s58
      %s62 = sphi 0, %s61
      %s78 = sphi 0, %s62
      %s84 = sphi 0, %s86
      %s87 = sphi 0, %s84
      %s88 = sphi 0, %s87
      %s104 = sphi 0, %s88
      %s110 = sphi 0, %s112
      %s113 = sphi 0, %s110
      %s114 = sphi 0, %s113
      %s130 = sphi 0, %s114
      %s138 = sphi 0, %s140
      %s141 = sphi 0, %s138
      %s142 = sphi 0, %s141
      %s158 = sphi 0, %s142
      %s162 = sphi 0, %s162
      %s164 = sphi 0, %s162
      %s165 = sphi 0, %s164
      %s179 = sphi 0, %s165
      %s183 = sphi 0, %s183
      %s185 = sphi 0, %s183
      %s186 = sphi 0, %s185
      %s200 = sphi 0, %s186
      %s204 = sphi 0, %s204
      %s206 = sphi 0, %s204
      %s207 = sphi 0, %s206
      %s221 = sphi 0, %s207
      %s225 = sphi 0, %s225
      %s227 = sphi 0, %s225
      %s228 = sphi 0, %s227
      %s242 = sphi 0, %s228
      %s246 = sphi 0, %s246
      %s248 = sphi 0, %s246
      %s249 = sphi 0, %s248
      %s263 = sphi 0, %s249
      %s267 = sphi 0, %s267
      %s269 = sphi 0, %s267
      %s270 = sphi 0, %s269
      %s284 = sphi 0, %s270
      %s288 = sphi 0, %s288
      %s290 = sphi 0, %s288
      %s291 = sphi 0, %s290
      %s305 = sphi 0, %s291
      %s309 = sphi 0, %s309
      %s311 = sphi 0, %s309
      %s312 = sphi 0, %s311
      %s326 = sphi 0, %s312
      %s334 = sphi 0, %s336
      %s337 = sphi 0, %s334
      %s338 = sphi 0, %s337
      %s354 = sphi 0, %s338
      %s362 = sphi 0, %s364
      %s365 = sphi 0, %s362
      %s366 = sphi 0, %s365
      %s382 = sphi 0, %s366
    $region4: #{tpu_custom_call.1} parent=1 // loop_header_branch
      %37 = sbr.rel (%p35) target = $region8
    $region5: #{tpu_custom_call.1} parent=1 // loop_body
      %s39 = ssub.s32 %s34, 1
      %s40 = ssub.s32 %s34, 2
      %s47 = sadd.s32 1, %s42
      %p48 = scmp.ge.s32.totalorder %s47, 1
      %s49 = scalar_select %p48, 0, %s47
      %s50 = sadd.s32 1, %s41
      %s51 = scalar_select %p48, %s50, %s41
      %p52 = scmp.ge.s32.totalorder %s51, 2
      %s53 = scalar_select %p52, 0, %s51
      %s54 = ssub.s32 %s41, %s53
      %s55 = ssub.s32 %s42, %s49
      %s56 = sor.u32 %s54, %s55
      %p57 = scmp.eq.s32.totalorder %s56, 0
      %s59 = sadd.s32 %s58, 1
      %s60 = scalar_select %p57, %s58, %s59
      %p63 = pneg %p57
      %p64 = scmp.eq.s32.totalorder %s34, 1
      %p65 = por %p63, %p64
      %p66 = scmp.ne.s32.totalorder %s58, %s61
      %p67 = scmp.eq.s32.totalorder %s34, 0
      %p68 = por %p66, %p67
      %p69 = scmp.ne.s32.totalorder %s58, %s61
      %p70 = scmp.eq.s32.totalorder %s39, 1
      %p71 = por %p69, %p70
      %p72 = scmp.ne.s32.totalorder %s61, %s62
      %p73 = scmp.eq.s32.totalorder %s39, 0
      %p74 = por %p72, %p73
      %p75 = scmp.ne.s32.totalorder %s61, %s62
      %p76 = scmp.eq.s32.totalorder %s40, 1
      %p77 = por %p75, %p76
      %p79 = scmp.ne.s32.totalorder %s62, %s78
      %p80 = scmp.eq.s32.totalorder %s40, 0
      %p81 = por %p79, %p80
      %s82 = ssub.s32 %s41, %s53
      %p83 = scmp.eq.s32.totalorder %s82, 0
      %s85 = sadd.s32 %s84, 1
      %s86 = scalar_select %p83, %s84, %s85
      %p89 = pneg %p83
      %p90 = scmp.eq.s32.totalorder %s34, 1
      %p91 = por %p89, %p90
      %p92 = scmp.ne.s32.totalorder %s84, %s87
      %p93 = scmp.eq.s32.totalorder %s34, 0
      %p94 = por %p92, %p93
      %p95 = scmp.ne.s32.totalorder %s84, %s87
      %p96 = scmp.eq.s32.totalorder %s39, 1
      %p97 = por %p95, %p96
      %p98 = scmp.ne.s32.totalorder %s87, %s88
      %p99 = scmp.eq.s32.totalorder %s39, 0
      %p100 = por %p98, %p99
      %p101 = scmp.ne.s32.totalorder %s87, %s88
      %p102 = scmp.eq.s32.totalorder %s40, 1
      %p103 = por %p101, %p102
      %p105 = scmp.ne.s32.totalorder %s88, %s104
      %p106 = scmp.eq.s32.totalorder %s40, 0
      %p107 = por %p105, %p106
      %s108 = ssub.s32 %s41, %s53
      %p109 = scmp.eq.s32.totalorder %s108, 0
      %s111 = sadd.s32 %s110, 1
      %s112 = scalar_select %p109, %s110, %s111
      %p115 = pneg %p109
      %p116 = scmp.eq.s32.totalorder %s34, 1
      %p117 = por %p115, %p116
      %p118 = scmp.ne.s32.totalorder %s110, %s113
      %p119 = scmp.eq.s32.totalorder %s34, 0
      %p120 = por %p118, %p119
      %p121 = scmp.ne.s32.totalorder %s110, %s113
      %p122 = scmp.eq.s32.totalorder %s39, 1
      %p123 = por %p121, %p122
      %p124 = scmp.ne.s32.totalorder %s113, %s114
      %p125 = scmp.eq.s32.totalorder %s39, 0
      %p126 = por %p124, %p125
      %p127 = scmp.ne.s32.totalorder %s113, %s114
      %p128 = scmp.eq.s32.totalorder %s40, 1
      %p129 = por %p127, %p128
      %p131 = scmp.ne.s32.totalorder %s114, %s130
      %p132 = scmp.eq.s32.totalorder %s40, 0
      %p133 = por %p131, %p132
      %s134 = ssub.s32 %s41, %s53
      %s135 = ssub.s32 %s42, %s49
      %s136 = sor.u32 %s134, %s135
      %p137 = scmp.eq.s32.totalorder %s136, 0
      %s139 = sadd.s32 %s138, 1
      %s140 = scalar_select %p137, %s138, %s139
      %p143 = pneg %p137
      %p144 = scmp.eq.s32.totalorder %s34, 1
      %p145 = por %p143, %p144
      %p146 = scmp.ne.s32.totalorder %s138, %s141
      %p147 = scmp.eq.s32.totalorder %s34, 0
      %p148 = por %p146, %p147
      %p149 = scmp.ne.s32.totalorder %s138, %s141
      %p150 = scmp.eq.s32.totalorder %s39, 1
      %p151 = por %p149, %p150
      %p152 = scmp.ne.s32.totalorder %s141, %s142
      %p153 = scmp.eq.s32.totalorder %s39, 0
      %p154 = por %p152, %p153
      %p155 = scmp.ne.s32.totalorder %s141, %s142
      %p156 = scmp.eq.s32.totalorder %s40, 1
      %p157 = por %p155, %p156
      %p159 = scmp.ne.s32.totalorder %s142, %s158
      %p160 = scmp.eq.s32.totalorder %s40, 0
      %p161 = por %p159, %p160
      %s163 = sadd.s32 %s162, 1
      %p166 = scmp.eq.s32.totalorder %s34, 1
      %p167 = scmp.ne.s32.totalorder %s162, %s164
      %p168 = scmp.eq.s32.totalorder %s34, 0
      %p169 = por %p167, %p168
      %p170 = scmp.ne.s32.totalorder %s162, %s164
      %p171 = scmp.eq.s32.totalorder %s39, 1
      %p172 = por %p170, %p171
      %p173 = scmp.ne.s32.totalorder %s164, %s165
      %p174 = scmp.eq.s32.totalorder %s39, 0
      %p175 = por %p173, %p174
      %p176 = scmp.ne.s32.totalorder %s164, %s165
      %p177 = scmp.eq.s32.totalorder %s40, 1
      %p178 = por %p176, %p177
      %p180 = scmp.ne.s32.totalorder %s165, %s179
      %p181 = scmp.eq.s32.totalorder %s40, 0
      %p182 = por %p180, %p181
      %s184 = sadd.s32 %s183, 1
      %p187 = scmp.eq.s32.totalorder %s34, 1
      %p188 = scmp.ne.s32.totalorder %s183, %s185
      %p189 = scmp.eq.s32.totalorder %s34, 0
      %p190 = por %p188, %p189
      %p191 = scmp.ne.s32.totalorder %s183, %s185
      %p192 = scmp.eq.s32.totalorder %s39, 1
      %p193 = por %p191, %p192
      %p194 = scmp.ne.s32.totalorder %s185, %s186
      %p195 = scmp.eq.s32.totalorder %s39, 0
      %p196 = por %p194, %p195
      %p197 = scmp.ne.s32.totalorder %s185, %s186
      %p198 = scmp.eq.s32.totalorder %s40, 1
      %p199 = por %p197, %p198
      %p201 = scmp.ne.s32.totalorder %s186, %s200
      %p202 = scmp.eq.s32.totalorder %s40, 0
      %p203 = por %p201, %p202
      %s205 = sadd.s32 %s204, 1
      %p208 = scmp.eq.s32.totalorder %s34, 1
      %p209 = scmp.ne.s32.totalorder %s204, %s206
      %p210 = scmp.eq.s32.totalorder %s34, 0
      %p211 = por %p209, %p210
      %p212 = scmp.ne.s32.totalorder %s204, %s206
      %p213 = scmp.eq.s32.totalorder %s39, 1
      %p214 = por %p212, %p213
      %p215 = scmp.ne.s32.totalorder %s206, %s207
      %p216 = scmp.eq.s32.totalorder %s39, 0
      %p217 = por %p215, %p216
      %p218 = scmp.ne.s32.totalorder %s206, %s207
      %p219 = scmp.eq.s32.totalorder %s40, 1
      %p220 = por %p218, %p219
      %p222 = scmp.ne.s32.totalorder %s207, %s221
      %p223 = scmp.eq.s32.totalorder %s40, 0
      %p224 = por %p222, %p223
      %s226 = sadd.s32 %s225, 1
      %p229 = scmp.eq.s32.totalorder %s34, 1
      %p230 = scmp.ne.s32.totalorder %s225, %s227
      %p231 = scmp.eq.s32.totalorder %s34, 0
      %p232 = por %p230, %p231
      %p233 = scmp.ne.s32.totalorder %s225, %s227
      %p234 = scmp.eq.s32.totalorder %s39, 1
      %p235 = por %p233, %p234
      %p236 = scmp.ne.s32.totalorder %s227, %s228
      %p237 = scmp.eq.s32.totalorder %s39, 0
      %p238 = por %p236, %p237
      %p239 = scmp.ne.s32.totalorder %s227, %s228
      %p240 = scmp.eq.s32.totalorder %s40, 1
      %p241 = por %p239, %p240
      %p243 = scmp.ne.s32.totalorder %s228, %s242
      %p244 = scmp.eq.s32.totalorder %s40, 0
      %p245 = por %p243, %p244
      %s247 = sadd.s32 %s246, 1
      %p250 = scmp.eq.s32.totalorder %s34, 1
      %p251 = scmp.ne.s32.totalorder %s246, %s248
      %p252 = scmp.eq.s32.totalorder %s34, 0
      %p253 = por %p251, %p252
      %p254 = scmp.ne.s32.totalorder %s246, %s248
      %p255 = scmp.eq.s32.totalorder %s39, 1
      %p256 = por %p254, %p255
      %p257 = scmp.ne.s32.totalorder %s248, %s249
      %p258 = scmp.eq.s32.totalorder %s39, 0
      %p259 = por %p257, %p258
      %p260 = scmp.ne.s32.totalorder %s248, %s249
      %p261 = scmp.eq.s32.totalorder %s40, 1
      %p262 = por %p260, %p261
      %p264 = scmp.ne.s32.totalorder %s249, %s263
      %p265 = scmp.eq.s32.totalorder %s40, 0
      %p266 = por %p264, %p265
      %s268 = sadd.s32 %s267, 1
      %p271 = scmp.eq.s32.totalorder %s34, 1
      %p272 = scmp.ne.s32.totalorder %s267, %s269
      %p273 = scmp.eq.s32.totalorder %s34, 0
      %p274 = por %p272, %p273
      %p275 = scmp.ne.s32.totalorder %s267, %s269
      %p276 = scmp.eq.s32.totalorder %s39, 1
      %p277 = por %p275, %p276
      %p278 = scmp.ne.s32.totalorder %s269, %s270
      %p279 = scmp.eq.s32.totalorder %s39, 0
      %p280 = por %p278, %p279
      %p281 = scmp.ne.s32.totalorder %s269, %s270
      %p282 = scmp.eq.s32.totalorder %s40, 1
      %p283 = por %p281, %p282
      %p285 = scmp.ne.s32.totalorder %s270, %s284
      %p286 = scmp.eq.s32.totalorder %s40, 0
      %p287 = por %p285, %p286
      %s289 = sadd.s32 %s288, 1
      %p292 = scmp.eq.s32.totalorder %s34, 1
      %p293 = scmp.ne.s32.totalorder %s288, %s290
      %p294 = scmp.eq.s32.totalorder %s34, 0
      %p295 = por %p293, %p294
      %p296 = scmp.ne.s32.totalorder %s288, %s290
      %p297 = scmp.eq.s32.totalorder %s39, 1
      %p298 = por %p296, %p297
      %p299 = scmp.ne.s32.totalorder %s290, %s291
      %p300 = scmp.eq.s32.totalorder %s39, 0
      %p301 = por %p299, %p300
      %p302 = scmp.ne.s32.totalorder %s290, %s291
      %p303 = scmp.eq.s32.totalorder %s40, 1
      %p304 = por %p302, %p303
      %p306 = scmp.ne.s32.totalorder %s291, %s305
      %p307 = scmp.eq.s32.totalorder %s40, 0
      %p308 = por %p306, %p307
      %s310 = sadd.s32 %s309, 1
      %p313 = scmp.eq.s32.totalorder %s34, 1
      %p314 = scmp.ne.s32.totalorder %s309, %s311
      %p315 = scmp.eq.s32.totalorder %s34, 0
      %p316 = por %p314, %p315
      %p317 = scmp.ne.s32.totalorder %s309, %s311
      %p318 = scmp.eq.s32.totalorder %s39, 1
      %p319 = por %p317, %p318
      %p320 = scmp.ne.s32.totalorder %s311, %s312
      %p321 = scmp.eq.s32.totalorder %s39, 0
      %p322 = por %p320, %p321
      %p323 = scmp.ne.s32.totalorder %s311, %s312
      %p324 = scmp.eq.s32.totalorder %s40, 1
      %p325 = por %p323, %p324
      %p327 = scmp.ne.s32.totalorder %s312, %s326
      %p328 = scmp.eq.s32.totalorder %s40, 0
      %p329 = por %p327, %p328
      %s330 = ssub.s32 %s41, %s53
      %s331 = ssub.s32 %s42, %s49
      %s332 = sor.u32 %s330, %s331
      %p333 = scmp.eq.s32.totalorder %s332, 0
      %s335 = sadd.s32 %s334, 1
      %s336 = scalar_select %p333, %s334, %s335
      %p339 = pneg %p333
      %p340 = scmp.eq.s32.totalorder %s34, 1
      %p341 = por %p339, %p340
      %p342 = scmp.ne.s32.totalorder %s334, %s337
      %p343 = scmp.eq.s32.totalorder %s34, 0
      %p344 = por %p342, %p343
      %p345 = scmp.ne.s32.totalorder %s334, %s337
      %p346 = scmp.eq.s32.totalorder %s39, 1
      %p347 = por %p345, %p346
      %p348 = scmp.ne.s32.totalorder %s337, %s338
      %p349 = scmp.eq.s32.totalorder %s39, 0
      %p350 = por %p348, %p349
      %p351 = scmp.ne.s32.totalorder %s337, %s338
      %p352 = scmp.eq.s32.totalorder %s40, 1
      %p353 = por %p351, %p352
      %p355 = scmp.ne.s32.totalorder %s338, %s354
      %p356 = scmp.eq.s32.totalorder %s40, 0
      %p357 = por %p355, %p356
      %s358 = ssub.s32 %s41, %s53
      %s359 = ssub.s32 %s42, %s49
      %s360 = sor.u32 %s358, %s359
      %p361 = scmp.eq.s32.totalorder %s360, 0
      %s363 = sadd.s32 %s362, 1
      %s364 = scalar_select %p361, %s362, %s363
      %p367 = pneg %p361
      %p368 = scmp.eq.s32.totalorder %s34, 1
      %p369 = por %p367, %p368
      %p370 = scmp.ne.s32.totalorder %s362, %s365
      %p371 = scmp.eq.s32.totalorder %s34, 0
      %p372 = por %p370, %p371
      %p373 = scmp.ne.s32.totalorder %s362, %s365
      %p374 = scmp.eq.s32.totalorder %s39, 1
      %p375 = por %p373, %p374
      %p376 = scmp.ne.s32.totalorder %s365, %s366
      %p377 = scmp.eq.s32.totalorder %s39, 0
      %p378 = por %p376, %p377
      %p379 = scmp.ne.s32.totalorder %s365, %s366
      %p380 = scmp.eq.s32.totalorder %s40, 1
      %p381 = por %p379, %p380
      %p383 = scmp.ne.s32.totalorder %s366, %s382
      %p384 = scmp.eq.s32.totalorder %s40, 0
      %p385 = por %p383, %p384
      %p386 = scmp.le.s32.totalorder 1, %s34
      %p387 = scmp.lt.s32.totalorder %s34, 3
      %p388 = pnand %p386, %p387
      %p389 = pneg %p388
      // Predicated region
      $region9: #{tpu_custom_call.1} parent=5 // pred_check
        _
      $region10: #{tpu_custom_call.1} parent=5 // pred_check_branch
        %391 = sbr.rel (%p388) target = $region12
      $region11: #{tpu_custom_call.1} parent=5 // pred_region
        %s392 = ssub.s32 %s34, 1
        // Predicated region
        $region13: #{tpu_custom_call.1} parent=11 // pred_check
          %p393 = pneg %p175
        $region14: #{tpu_custom_call.1} parent=11 // pred_check_branch
          %395 = sbr.rel (%p393) target = $region16
        $region15: #{tpu_custom_call.1} parent=11 // pred_region
          %s397 = ssub.s32 512, 512
          %398 = vsyncadd [#allocation9], %s397
          %s399 = sshll.u32 [#allocation8], 4
          %s400 = int_to_ptr.vmem [resolvable:$true] %s399
          %405 = dma.hbm_to_vmem [thread:$0]  %s4, 512, %s400, [#allocation9], 128, 128, 8
        $region16: #{tpu_custom_call.1} parent=11 // pred_fallthru
          _
        // Predicated region
        $region17: #{tpu_custom_call.1} parent=11 // pred_check
          %p406 = pneg %p196
        $region18: #{tpu_custom_call.1} parent=11 // pred_check_branch
          %408 = sbr.rel (%p406) target = $region20
        $region19: #{tpu_custom_call.1} parent=11 // pred_region
          %s410 = ssub.s32 512, 512
          %411 = vsyncadd [#allocation9], %s410
          %s412 = sshll.u32 [#allocation10], 4
          %s413 = int_to_ptr.vmem [resolvable:$true] %s412
          %418 = dma.hbm_to_vmem [thread:$0]  %s5, 512, %s413, [#allocation9], 128, 128, 8
        $region20: #{tpu_custom_call.1} parent=11 // pred_fallthru
          _
        // Predicated region
        $region21: #{tpu_custom_call.1} parent=11 // pred_check
          %p419 = pneg %p217
        $region22: #{tpu_custom_call.1} parent=11 // pred_check_branch
          %421 = sbr.rel (%p419) target = $region24
        $region23: #{tpu_custom_call.1} parent=11 // pred_region
          %s423 = ssub.s32 512, 512
          %424 = vsyncadd [#allocation12], %s423
          %s425 = sshll.u32 [#allocation11], 4
          %s426 = int_to_ptr.vmem [resolvable:$true] %s425
          %431 = dma.hbm_to_vmem [thread:$0]  %s6, 512, %s426, [#allocation12], 128, 128, 8
        $region24: #{tpu_custom_call.1} parent=11 // pred_fallthru
          _
        // Predicated region
        $region25: #{tpu_custom_call.1} parent=11 // pred_check
          %p432 = pneg %p238
        $region26: #{tpu_custom_call.1} parent=11 // pred_check_branch
          %434 = sbr.rel (%p432) target = $region28
        $region27: #{tpu_custom_call.1} parent=11 // pred_region
          %s436 = ssub.s32 512, 512
          %437 = vsyncadd [#allocation12], %s436
          %s438 = sshll.u32 [#allocation13], 4
          %s439 = int_to_ptr.vmem [resolvable:$true] %s438
          %444 = dma.hbm_to_vmem [thread:$0]  %s7, 512, %s439, [#allocation12], 128, 128, 8
        $region28: #{tpu_custom_call.1} parent=11 // pred_fallthru
          _
        // Predicated region
        $region29: #{tpu_custom_call.1} parent=11 // pred_check
          %p445 = pneg %p259
        $region30: #{tpu_custom_call.1} parent=11 // pred_check_branch
          %447 = sbr.rel (%p445) target = $region32
        $region31: #{tpu_custom_call.1} parent=11 // pred_region
          _
        $region32: #{tpu_custom_call.1} parent=11 // pred_fallthru
          _
        // Predicated region
        $region33: #{tpu_custom_call.1} parent=11 // pred_check
          %p448 = pneg %p280
        $region34: #{tpu_custom_call.1} parent=11 // pred_check_branch
          %450 = sbr.rel (%p448) target = $region36
        $region35: #{tpu_custom_call.1} parent=11 // pred_region
          _
        $region36: #{tpu_custom_call.1} parent=11 // pred_fallthru
          _
        // Predicated region
        $region37: #{tpu_custom_call.1} parent=11 // pred_check
          %p451 = pneg %p301
        $region38: #{tpu_custom_call.1} parent=11 // pred_check_branch
          %453 = sbr.rel (%p451) target = $region40
        $region39: #{tpu_custom_call.1} parent=11 // pred_region
          _
        $region40: #{tpu_custom_call.1} parent=11 // pred_fallthru
          _
        // Predicated region
        $region41: #{tpu_custom_call.1} parent=11 // pred_check
          %p454 = pneg %p322
        $region42: #{tpu_custom_call.1} parent=11 // pred_check_branch
          %456 = sbr.rel (%p454) target = $region44
        $region43: #{tpu_custom_call.1} parent=11 // pred_region
          _
        $region44: #{tpu_custom_call.1} parent=11 // pred_fallthru
          _
      $region12: #{tpu_custom_call.1} parent=5 // pred_fallthru
        _
      %p457 = scmp.lt.s32.totalorder %s34, 2
      // Predicated region
      $region45: #{tpu_custom_call.1} parent=5 // pred_check
        %p458 = pneg %p457
      $region46: #{tpu_custom_call.1} parent=5 // pred_check_branch
        %460 = sbr.rel (%p458) target = $region48
      $region47: #{tpu_custom_call.1} parent=5 // pred_region
        // Predicated region
        $region49: #{tpu_custom_call.1} parent=47 // pred_check
          %p461 = pneg %p68
        $region50: #{tpu_custom_call.1} parent=47 // pred_check_branch
          %463 = sbr.rel (%p461) target = $region52
        $region51: #{tpu_custom_call.1} parent=47 // pred_region
          %s464 = sand.u32 %s58, 1
          %s465 = scalar_lea.sflag [#allocation3], %s464
          %s466 = sand.u32 %s58, 1
          %s467 = smul.addr %s466, 8
          %s468 = scalar_lea.vmem [#allocation2], %s467
          %s470 = ssub.s32 128, 128
          %471 = vsyncadd %s465, %s470
          %s472 = sadd.s32 %s42, %s41
          %s473 = smul.addr %s472, 128
          %s474 = scalar_lea.hbm %s0, %s473
          %s476 = sshll.u32 %s468, 4
          %s477 = int_to_ptr.vmem [resolvable:$true] %s476
          %479 = dma.hbm_to_vmem [thread:$0]  %s474, 128, %s477, %s465
        $region52: #{tpu_custom_call.1} parent=47 // pred_fallthru
          _
        // Predicated region
        $region53: #{tpu_custom_call.1} parent=47 // pred_check
          %p480 = pneg %p94
        $region54: #{tpu_custom_call.1} parent=47 // pred_check_branch
          %482 = sbr.rel (%p480) target = $region56
        $region55: #{tpu_custom_call.1} parent=47 // pred_region
          %s483 = sand.u32 %s34, 1
          %s484 = scalar_lea.sflag [#allocation6], %s483
          %s485 = sand.u32 %s84, 1
          %s486 = smul.addr %s485, 8
          %s487 = scalar_lea.vmem [#allocation5], %s486
          %s489 = ssub.s32 128, 128
          %490 = vsyncadd %s484, %s489
          %s491 = smul.addr %s41, 128
          %s492 = scalar_lea.hbm %s1, %s491
          %s494 = sshll.u32 %s487, 4
          %s495 = int_to_ptr.vmem [resolvable:$true] %s494
          %497 = dma.hbm_to_vmem [thread:$0]  %s492, 128, %s495, %s484
        $region56: #{tpu_custom_call.1} parent=47 // pred_fallthru
          _
        // Predicated region
        $region57: #{tpu_custom_call.1} parent=47 // pred_check
          %p498 = pneg %p120
        $region58: #{tpu_custom_call.1} parent=47 // pred_check_branch
          %500 = sbr.rel (%p498) target = $region60
        $region59: #{tpu_custom_call.1} parent=47 // pred_region
          %s501 = sand.u32 %s34, 1
          %s502 = scalar_lea.sflag [#allocation6], %s501
          %s503 = sand.u32 %s110, 1
          %s504 = smul.addr %s503, 8
          %s505 = scalar_lea.vmem [#allocation7], %s504
          %s507 = ssub.s32 128, 128
          %508 = vsyncadd %s502, %s507
          %s509 = smul.addr %s41, 128
          %s510 = scalar_lea.hbm %s2, %s509
          %s512 = sshll.u32 %s505, 4
          %s513 = int_to_ptr.vmem [resolvable:$true] %s512
          %515 = dma.hbm_to_vmem [thread:$0]  %s510, 128, %s513, %s502
        $region60: #{tpu_custom_call.1} parent=47 // pred_fallthru
          _
        // Predicated region
        $region61: #{tpu_custom_call.1} parent=47 // pred_check
          %p516 = pneg %p148
        $region62: #{tpu_custom_call.1} parent=47 // pred_check_branch
          %518 = sbr.rel (%p516) target = $region64
        $region63: #{tpu_custom_call.1} parent=47 // pred_region
          %p519 = scmp.lt.s32.totalorder %s41, 1
          %s520 = scalar_select %p519, %s41, 1
          %p521 = scmp.lt.s32.totalorder %s42, 0
          %s522 = scalar_select %p521, %s42, 0
          %s523 = sadd.s32 %s522, %s520
          %s524 = smul.addr %s523, 2
          %s525 = scalar_lea.vmem %s3, %s524
        $region64: #{tpu_custom_call.1} parent=47 // pred_fallthru
          _
      $region48: #{tpu_custom_call.1} parent=5 // pred_fallthru
        _
      %p526 = scmp.le.s32.totalorder 1, %s34
      %p527 = scmp.lt.s32.totalorder %s34, 3
      %p528 = pnand %p526, %p527
      %p529 = pneg %p528
      // Predicated region
      $region65: #{tpu_custom_call.1} parent=5 // pred_check
        _
      $region66: #{tpu_custom_call.1} parent=5 // pred_check_branch
        %531 = sbr.rel (%p528) target = $region68
      $region67: #{tpu_custom_call.1} parent=5 // pred_region
        %s532 = ssub.s32 %s34, 1
        %s533 = sand.u32 %s61, 1
        %s534 = scalar_lea.sflag [#allocation3], %s533
        %s535 = sand.u32 %s61, 1
        %s536 = smul.addr %s535, 8
        %s537 = scalar_lea.vmem [#allocation2], %s536
        // Predicated region
        $region69: #{tpu_custom_call.1} parent=67 // pred_check
          %p538 = pneg %p74
        $region70: #{tpu_custom_call.1} parent=67 // pred_check_branch
          %540 = sbr.rel (%p538) target = $region72
        $region71: #{tpu_custom_call.1} parent=67 // pred_region
          %541 = dma.done %s534, 128
        $region72: #{tpu_custom_call.1} parent=67 // pred_fallthru
          _
        %s542 = sand.u32 %s39, 1
        %s543 = scalar_lea.sflag [#allocation6], %s542
        %s544 = sand.u32 %s87, 1
        %s545 = smul.addr %s544, 8
        %s546 = scalar_lea.vmem [#allocation5], %s545
        // Predicated region
        $region73: #{tpu_custom_call.1} parent=67 // pred_check
          %p547 = pneg %p100
        $region74: #{tpu_custom_call.1} parent=67 // pred_check_branch
          %549 = sbr.rel (%p547) target = $region76
        $region75: #{tpu_custom_call.1} parent=67 // pred_region
          %550 = dma.done %s543, 128
        $region76: #{tpu_custom_call.1} parent=67 // pred_fallthru
          _
        %s551 = sand.u32 %s39, 1
        %s552 = scalar_lea.sflag [#allocation6], %s551
        %s553 = sand.u32 %s113, 1
        %s554 = smul.addr %s553, 8
        %s555 = scalar_lea.vmem [#allocation7], %s554
        // Predicated region
        $region77: #{tpu_custom_call.1} parent=67 // pred_check
          %p556 = pneg %p126
        $region78: #{tpu_custom_call.1} parent=67 // pred_check_branch
          %558 = sbr.rel (%p556) target = $region80
        $region79: #{tpu_custom_call.1} parent=67 // pred_region
          %559 = dma.done %s552, 128
        $region80: #{tpu_custom_call.1} parent=67 // pred_fallthru
          _
        // Predicated region
        $region81: #{tpu_custom_call.1} parent=67 // pred_check
          %p560 = pneg %p175
        $region82: #{tpu_custom_call.1} parent=67 // pred_check_branch
          %562 = sbr.rel (%p560) target = $region84
        $region83: #{tpu_custom_call.1} parent=67 // pred_region
          %563 = dma.done [#allocation9], 512
        $region84: #{tpu_custom_call.1} parent=67 // pred_fallthru
          _
        // Predicated region
        $region85: #{tpu_custom_call.1} parent=67 // pred_check
          %p564 = pneg %p196
        $region86: #{tpu_custom_call.1} parent=67 // pred_check_branch
          %566 = sbr.rel (%p564) target = $region88
        $region87: #{tpu_custom_call.1} parent=67 // pred_region
          %567 = dma.done [#allocation9], 512
        $region88: #{tpu_custom_call.1} parent=67 // pred_fallthru
          _
        // Predicated region
        $region89: #{tpu_custom_call.1} parent=67 // pred_check
          %p568 = pneg %p217
        $region90: #{tpu_custom_call.1} parent=67 // pred_check_branch
          %570 = sbr.rel (%p568) target = $region92
        $region91: #{tpu_custom_call.1} parent=67 // pred_region
          %571 = dma.done [#allocation12], 512
        $region92: #{tpu_custom_call.1} parent=67 // pred_fallthru
          _
        // Predicated region
        $region93: #{tpu_custom_call.1} parent=67 // pred_check
          %p572 = pneg %p238
        $region94: #{tpu_custom_call.1} parent=67 // pred_check_branch
          %574 = sbr.rel (%p572) target = $region96
        $region95: #{tpu_custom_call.1} parent=67 // pred_region
          %575 = dma.done [#allocation12], 512
        $region96: #{tpu_custom_call.1} parent=67 // pred_fallthru
          _
        %s576 = sand.u32 %s61, 1
        %s577 = scalar_lea.sflag [#allocation3], %s576
        %s578 = sand.u32 %s61, 1
        %s579 = smul.addr %s578, 8
        %s580 = scalar_lea.vmem [#allocation2], %s579
        %p581 = pneg %p74
        %p582 = pneg %p71
        %s583 = sand.u32 %s39, 1
        %s584 = scalar_lea.sflag [#allocation6], %s583
        %s585 = sand.u32 %s87, 1
        %s586 = smul.addr %s585, 8
        %s587 = scalar_lea.vmem [#allocation5], %s586
        %p588 = pneg %p100
        %p589 = pneg %p97
        %s590 = sand.u32 %s39, 1
        %s591 = scalar_lea.sflag [#allocation6], %s590
        %s592 = sand.u32 %s113, 1
        %s593 = smul.addr %s592, 8
        %s594 = scalar_lea.vmem [#allocation7], %s593
        %p595 = pneg %p126
        %p596 = pneg %p123
        %p597 = scmp.lt.s32.totalorder %s43, 1
        %s598 = scalar_select %p597, %s43, 1
        %p599 = scmp.lt.s32.totalorder %s44, 0
        %s600 = scalar_select %p599, %s44, 0
        %s601 = sadd.s32 %s600, %s598
        %s602 = smul.addr %s601, 2
        %s603 = scalar_lea.vmem %s3, %s602
        %p604 = pneg %p154
        %p605 = pneg %p151
        %p606 = pneg %p175
        %p607 = pneg %p172
        %p608 = pneg %p196
        %p609 = pneg %p193
        %p610 = pneg %p217
        %p611 = pneg %p214
        %p612 = pneg %p238
        %p613 = pneg %p235
        %p614 = pneg %p259
        %p615 = pneg %p256
        %p616 = pneg %p280
        %p617 = pneg %p277
        %p618 = pneg %p301
        %p619 = pneg %p298
        %p620 = pneg %p322
        %p621 = pneg %p319
        %p622 = pneg %p350
        %p623 = pneg %p347
        %s624 = sand.u32 %s337, 1
        %s625 = scalar_lea.sflag [#allocation4], %s624
        %s626 = sand.u32 %s337, 1
        %s627 = smul.addr %s626, 8
        %s628 = scalar_lea.vmem [#allocation14], %s627
        %p629 = pneg %p378
        %p630 = pneg %p375
        %s631 = sand.u32 %s365, 1
        %s632 = scalar_lea.sflag [#allocation16], %s631
        %s633 = sand.u32 %s365, 1
        %s634 = smul.addr %s633, 32
        %s635 = scalar_lea.vmem [#allocation15], %s634
        %p636 = scmp.lt.s32.totalorder %s43, 1
        %s637 = scalar_select %p636, %s43, 1
        %p638 = scmp.lt.s32.totalorder %s44, 0
        %s639 = scalar_select %p638, %s44, 0
        %s640 = sadd.s32 %s639, %s637
        %s641 = smul.addr %s640, 2
        %s642 = scalar_lea.vmem %s3, %s641
        %v643 = vld [vmem:[%s537] sm:$0xff]
        %v644 = vld [vmem:[#allocation8] sm:$0xff]
        %v645 = vld [vmem:[#allocation8 + $0x8] sm:$0xff]
        %v646 = vld [vmem:[#allocation8 + $0x10] sm:$0xff]
        %v647 = vld [vmem:[#allocation8 + $0x18] sm:$0xff]
        %v648 = vld [vmem:[%s8] sm:$0x1]
        %v650 = vlaneseq
        %v651 = vshrl.u32 %v650, 7
        %v652 = vsub.s32 0, %v651
        %v653 = vrot.slane %v648, %v652
        %vm655 = vcmask 261120
        %v657 = vsel %vm655, %v643, 0
        %659 = vmatprep.subr.mxu0 0.0
        %660 = vmatpush1.msra.mxu0 0.0
        %661 = vmatprep.subr.mxu0 0.0
        %662 = vmatpush1.msra.mxu0 0.0
        %663 = vmatprep.subr.mxu0 0.0
        %664 = vmatpush1.msra.mxu0 0.0
        %665 = vmatprep.subr.mxu0 0.0
        %666 = vmatpush1.msra.mxu0 0.0
        %667 = vmatprep.subr.mxu0 0.0
        %668 = vmatpush1.msra.mxu0 0.0
        %669 = vmatprep.subr.mxu0 0.0
        %670 = vmatpush1.msra.mxu0 0.0
        %671 = vmatprep.subr.mxu0 0.0
        %672 = vmatpush1.msra.mxu0 0.0
        %673 = vmatprep.subr.mxu0 0.0
        %674 = vmatpush1.msra.mxu0 0.0
        %675 = vmatprep.subr.mxu0 0.0
        %676 = vmatpush1.msra.mxu0 0.0
        %677 = vmatprep.subr.mxu0 0.0
        %678 = vmatpush1.msra.mxu0 0.0
        %679 = vmatprep.subr.mxu0 0.0
        %680 = vmatpush1.msra.mxu0 0.0
        %681 = vmatprep.subr.mxu0 0.0
        %682 = vmatpush1.msra.mxu0 0.0
        %683 = vmatprep.subr.mxu0 0.0
        %684 = vmatpush1.msra.mxu0 %v647
        %685 = vmatprep.subr.mxu0 0.0
        %686 = vmatpush1.msra.mxu0 %v646
        %687 = vmatprep.subr.mxu0 0.0
        %688 = vmatpush1.msra.mxu0 %v645
        %689 = vmatprep.subr.mxu0 0.0
        %690 = vmatpush1.msra.mxu0 %v644
        %691 = vmatprep.subr.mxu0 0.0
        %692 = vmatpush2.msra.mxu0 0.0
        %693 = vmatprep.subr.mxu0 0.0
        %694 = vmatpush2.msra.mxu0 0.0
        %695 = vmatprep.subr.mxu0 0.0
        %696 = vmatpush2.msra.mxu0 0.0
        %697 = vmatprep.subr.mxu0 0.0
        %698 = vmatpush2.msra.mxu0 0.0
        %699 = vmatprep.subr.mxu0 0.0
        %700 = vmatpush2.msra.mxu0 0.0
        %701 = vmatprep.subr.mxu0 0.0
        %702 = vmatpush2.msra.mxu0 0.0
        %703 = vmatprep.subr.mxu0 0.0
        %704 = vmatpush2.msra.mxu0 0.0
        %705 = vmatprep.subr.mxu0 0.0
        %706 = vmatpush2.msra.mxu0 0.0
        %707 = vmatprep.subr.mxu0 0.0
        %708 = vmatpush2.msra.mxu0 0.0
        %709 = vmatprep.subr.mxu0 0.0
        %710 = vmatpush2.msra.mxu0 0.0
        %711 = vmatprep.subr.mxu0 0.0
        %712 = vmatpush2.msra.mxu0 0.0
        %713 = vmatprep.subr.mxu0 0.0
        %714 = vmatpush2.msra.mxu0 0.0
        %715 = vmatprep.subr.mxu0 0.0
        %716 = vmatpush2.msra.mxu0 0.0
        %717 = vmatprep.subr.mxu0 0.0
        %718 = vmatpush2.msra.mxu0 0.0
        %719 = vmatprep.subr.mxu0 0.0
        %720 = vmatpush2.msra.mxu0 0.0
        %721 = vmatprep.subr.mxu0 0.0
        %722 = vmatpush2.msra.mxu0 0.0
        %723 = vmatprep.mubr.f32.mxu0 0.0
        %724 = vmatmul.mubr.f32.gmra.mxu0 %v657
        %v725 = vpop.f32.mrf.mxu0
        %v726 = vadd.f32 %v653, %v725
        %v727 = vpop.f32.mrf.mxu0
        %728 = vdwg.mxu0
        %v729 = vld [vmem:[%s546] sm:$0xff]
        %v730 = vld [vmem:[#allocation10] sm:$0xff]
        %v731 = vld [vmem:[#allocation10 + $0x8] sm:$0xff]
        %v732 = vld [vmem:[#allocation10 + $0x10] sm:$0xff]
        %v733 = vld [vmem:[#allocation10 + $0x18] sm:$0xff]
        %v734 = vld [vmem:[%s9] sm:$0x1]
        %v736 = vlaneseq
        %v737 = vshrl.u32 %v736, 7
        %v738 = vsub.s32 0, %v737
        %v739 = vrot.slane %v734, %v738
        %v742 = vsel %vm655, %v729, 0
        %744 = vmatprep.subr.mxu0 0.0
        %745 = vmatpush1.msra.mxu0 0.0
        %746 = vmatprep.subr.mxu0 0.0
        %747 = vmatpush1.msra.mxu0 0.0
        %748 = vmatprep.subr.mxu0 0.0
        %749 = vmatpush1.msra.mxu0 0.0
        %750 = vmatprep.subr.mxu0 0.0
        %751 = vmatpush1.msra.mxu0 0.0
        %752 = vmatprep.subr.mxu0 0.0
        %753 = vmatpush1.msra.mxu0 0.0
        %754 = vmatprep.subr.mxu0 0.0
        %755 = vmatpush1.msra.mxu0 0.0
        %756 = vmatprep.subr.mxu0 0.0
        %757 = vmatpush1.msra.mxu0 0.0
        %758 = vmatprep.subr.mxu0 0.0
        %759 = vmatpush1.msra.mxu0 0.0
        %760 = vmatprep.subr.mxu0 0.0
        %761 = vmatpush1.msra.mxu0 0.0
        %762 = vmatprep.subr.mxu0 0.0
        %763 = vmatpush1.msra.mxu0 0.0
        %764 = vmatprep.subr.mxu0 0.0
        %765 = vmatpush1.msra.mxu0 0.0
        %766 = vmatprep.subr.mxu0 0.0
        %767 = vmatpush1.msra.mxu0 0.0
        %768 = vmatprep.subr.mxu0 0.0
        %769 = vmatpush1.msra.mxu0 %v733
        %770 = vmatprep.subr.mxu0 0.0
        %771 = vmatpush1.msra.mxu0 %v732
        %772 = vmatprep.subr.mxu0 0.0
        %773 = vmatpush1.msra.mxu0 %v731
        %774 = vmatprep.subr.mxu0 0.0
        %775 = vmatpush1.msra.mxu0 %v730
        %776 = vmatprep.subr.mxu0 0.0
        %777 = vmatpush2.msra.mxu0 0.0
        %778 = vmatprep.subr.mxu0 0.0
        %779 = vmatpush2.msra.mxu0 0.0
        %780 = vmatprep.subr.mxu0 0.0
        %781 = vmatpush2.msra.mxu0 0.0
        %782 = vmatprep.subr.mxu0 0.0
        %783 = vmatpush2.msra.mxu0 0.0
        %784 = vmatprep.subr.mxu0 0.0
        %785 = vmatpush2.msra.mxu0 0.0
        %786 = vmatprep.subr.mxu0 0.0
        %787 = vmatpush2.msra.mxu0 0.0
        %788 = vmatprep.subr.mxu0 0.0
        %789 = vmatpush2.msra.mxu0 0.0
        %790 = vmatprep.subr.mxu0 0.0
        %791 = vmatpush2.msra.mxu0 0.0
        %792 = vmatprep.subr.mxu0 0.0
        %793 = vmatpush2.msra.mxu0 0.0
        %794 = vmatprep.subr.mxu0 0.0
        %795 = vmatpush2.msra.mxu0 0.0
        %796 = vmatprep.subr.mxu0 0.0
        %797 = vmatpush2.msra.mxu0 0.0
        %798 = vmatprep.subr.mxu0 0.0
        %799 = vmatpush2.msra.mxu0 0.0
        %800 = vmatprep.subr.mxu0 0.0
        %801 = vmatpush2.msra.mxu0 0.0
        %802 = vmatprep.subr.mxu0 0.0
        %803 = vmatpush2.msra.mxu0 0.0
        %804 = vmatprep.subr.mxu0 0.0
        %805 = vmatpush2.msra.mxu0 0.0
        %806 = vmatprep.subr.mxu0 0.0
        %807 = vmatpush2.msra.mxu0 0.0
        %808 = vmatprep.mubr.f32.mxu0 0.0
        %809 = vmatmul.mubr.f32.gmra.mxu0 %v742
        %v810 = vpop.f32.mrf.mxu0
        %v811 = vadd.f32 %v739, %v810
        %v812 = vpop.f32.mrf.mxu0
        %813 = vdwg.mxu0
        %v814 = vld [vmem:[%s555] sm:$0xff]
        %v815 = vld [vmem:[#allocation11] sm:$0xff]
        %v816 = vld [vmem:[#allocation11 + $0x8] sm:$0xff]
        %v817 = vld [vmem:[#allocation11 + $0x10] sm:$0xff]
        %v818 = vld [vmem:[#allocation11 + $0x18] sm:$0xff]
        %v819 = vld [vmem:[%s10] sm:$0x1]
        %v821 = vlaneseq
        %v822 = vshrl.u32 %v821, 7
        %v823 = vsub.s32 0, %v822
        %v824 = vrot.slane %v819, %v823
        %v827 = vsel %vm655, %v814, 0
        %829 = vmatprep.subr.mxu0 0.0
        %830 = vmatpush1.msra.mxu0 0.0
        %831 = vmatprep.subr.mxu0 0.0
        %832 = vmatpush1.msra.mxu0 0.0
        %833 = vmatprep.subr.mxu0 0.0
        %834 = vmatpush1.msra.mxu0 0.0
        %835 = vmatprep.subr.mxu0 0.0
        %836 = vmatpush1.msra.mxu0 0.0
        %837 = vmatprep.subr.mxu0 0.0
        %838 = vmatpush1.msra.mxu0 0.0
        %839 = vmatprep.subr.mxu0 0.0
        %840 = vmatpush1.msra.mxu0 0.0
        %841 = vmatprep.subr.mxu0 0.0
        %842 = vmatpush1.msra.mxu0 0.0
        %843 = vmatprep.subr.mxu0 0.0
        %844 = vmatpush1.msra.mxu0 0.0
        %845 = vmatprep.subr.mxu0 0.0
        %846 = vmatpush1.msra.mxu0 0.0
        %847 = vmatprep.subr.mxu0 0.0
        %848 = vmatpush1.msra.mxu0 0.0
        %849 = vmatprep.subr.mxu0 0.0
        %850 = vmatpush1.msra.mxu0 0.0
        %851 = vmatprep.subr.mxu0 0.0
        %852 = vmatpush1.msra.mxu0 0.0
        %853 = vmatprep.subr.mxu0 0.0
        %854 = vmatpush1.msra.mxu0 %v818
        %855 = vmatprep.subr.mxu0 0.0
        %856 = vmatpush1.msra.mxu0 %v817
        %857 = vmatprep.subr.mxu0 0.0
        %858 = vmatpush1.msra.mxu0 %v816
        %859 = vmatprep.subr.mxu0 0.0
        %860 = vmatpush1.msra.mxu0 %v815
        %861 = vmatprep.subr.mxu0 0.0
        %862 = vmatpush2.msra.mxu0 0.0
        %863 = vmatprep.subr.mxu0 0.0
        %864 = vmatpush2.msra.mxu0 0.0
        %865 = vmatprep.subr.mxu0 0.0
        %866 = vmatpush2.msra.mxu0 0.0
        %867 = vmatprep.subr.mxu0 0.0
        %868 = vmatpush2.msra.mxu0 0.0
        %869 = vmatprep.subr.mxu0 0.0
        %870 = vmatpush2.msra.mxu0 0.0
        %871 = vmatprep.subr.mxu0 0.0
        %872 = vmatpush2.msra.mxu0 0.0
        %873 = vmatprep.subr.mxu0 0.0
        %874 = vmatpush2.msra.mxu0 0.0
        %875 = vmatprep.subr.mxu0 0.0
        %876 = vmatpush2.msra.mxu0 0.0
        %877 = vmatprep.subr.mxu0 0.0
        %878 = vmatpush2.msra.mxu0 0.0
        %879 = vmatprep.subr.mxu0 0.0
        %880 = vmatpush2.msra.mxu0 0.0
        %881 = vmatprep.subr.mxu0 0.0
        %882 = vmatpush2.msra.mxu0 0.0
        %883 = vmatprep.subr.mxu0 0.0
        %884 = vmatpush2.msra.mxu0 0.0
        %885 = vmatprep.subr.mxu0 0.0
        %886 = vmatpush2.msra.mxu0 0.0
        %887 = vmatprep.subr.mxu0 0.0
        %888 = vmatpush2.msra.mxu0 0.0
        %889 = vmatprep.subr.mxu0 0.0
        %890 = vmatpush2.msra.mxu0 0.0
        %891 = vmatprep.subr.mxu0 0.0
        %892 = vmatpush2.msra.mxu0 0.0
        %893 = vmatprep.mubr.f32.mxu0 0.0
        %894 = vmatmul.mubr.f32.gmra.mxu0 %v827
        %v895 = vpop.f32.mrf.mxu0
        %v896 = vadd.f32 %v824, %v895
        %v897 = vpop.f32.mrf.mxu0
        %898 = vdwg.mxu0
        %vm899 = vcmask 64512
        %v901 = vsel %vm899, %v726, 0
        %v904 = vsel %vm899, %v811, 0
        %906 = vmatprep.subr.mxu0 0.0
        %907 = vmatpush1.xpose.msra.mxu0 0.0
        %908 = vmatprep.subr.mxu0 0.0
        %909 = vmatpush1.xpose.msra.mxu0 0.0
        %910 = vmatprep.subr.mxu0 0.0
        %911 = vmatpush1.xpose.msra.mxu0 0.0
        %912 = vmatprep.subr.mxu0 0.0
        %913 = vmatpush1.xpose.msra.mxu0 0.0
        %914 = vmatprep.subr.mxu0 0.0
        %915 = vmatpush1.xpose.msra.mxu0 0.0
        %916 = vmatprep.subr.mxu0 0.0
        %917 = vmatpush1.xpose.msra.mxu0 0.0
        %918 = vmatprep.subr.mxu0 0.0
        %919 = vmatpush1.xpose.msra.mxu0 0.0
        %920 = vmatprep.subr.mxu0 0.0
        %921 = vmatpush1.xpose.msra.mxu0 0.0
        %922 = vmatprep.subr.mxu0 0.0
        %923 = vmatpush1.xpose.msra.mxu0 0.0
        %924 = vmatprep.subr.mxu0 0.0
        %925 = vmatpush1.xpose.msra.mxu0 0.0
        %926 = vmatprep.subr.mxu0 0.0
        %927 = vmatpush1.xpose.msra.mxu0 0.0
        %928 = vmatprep.subr.mxu0 0.0
        %929 = vmatpush1.xpose.msra.mxu0 0.0
        %930 = vmatprep.subr.mxu0 0.0
        %931 = vmatpush1.xpose.msra.mxu0 0.0
        %932 = vmatprep.subr.mxu0 0.0
        %933 = vmatpush1.xpose.msra.mxu0 0.0
        %934 = vmatprep.subr.mxu0 0.0
        %935 = vmatpush1.xpose.msra.mxu0 0.0
        %936 = vmatprep.subr.mxu0 0.0
        %937 = vmatpush1.xpose.msra.mxu0 %v904
        %938 = vmatprep.subr.mxu0 0.0
        %939 = vmatpush2.xpose.msra.mxu0 0.0
        %940 = vmatprep.subr.mxu0 0.0
        %941 = vmatpush2.xpose.msra.mxu0 0.0
        %942 = vmatprep.subr.mxu0 0.0
        %943 = vmatpush2.xpose.msra.mxu0 0.0
        %944 = vmatprep.subr.mxu0 0.0
        %945 = vmatpush2.xpose.msra.mxu0 0.0
        %946 = vmatprep.subr.mxu0 0.0
        %947 = vmatpush2.xpose.msra.mxu0 0.0
        %948 = vmatprep.subr.mxu0 0.0
        %949 = vmatpush2.xpose.msra.mxu0 0.0
        %950 = vmatprep.subr.mxu0 0.0
        %951 = vmatpush2.xpose.msra.mxu0 0.0
        %952 = vmatprep.subr.mxu0 0.0
        %953 = vmatpush2.xpose.msra.mxu0 0.0
        %954 = vmatprep.subr.mxu0 0.0
        %955 = vmatpush2.xpose.msra.mxu0 0.0
        %956 = vmatprep.subr.mxu0 0.0
        %957 = vmatpush2.xpose.msra.mxu0 0.0
        %958 = vmatprep.subr.mxu0 0.0
        %959 = vmatpush2.xpose.msra.mxu0 0.0
        %960 = vmatprep.subr.mxu0 0.0
        %961 = vmatpush2.xpose.msra.mxu0 0.0
        %962 = vmatprep.subr.mxu0 0.0
        %963 = vmatpush2.xpose.msra.mxu0 0.0
        %964 = vmatprep.subr.mxu0 0.0
        %965 = vmatpush2.xpose.msra.mxu0 0.0
        %966 = vmatprep.subr.mxu0 0.0
        %967 = vmatpush2.xpose.msra.mxu0 0.0
        %968 = vmatprep.subr.mxu0 0.0
        %969 = vmatpush2.xpose.msra.mxu0 0.0
        %970 = vmatprep.mubr.f32.mxu0 0.0
        %971 = vmatmul.mubr.f32.gmra.mxu0 %v901
        %v972 = vpop.f32.mrf.mxu0
        %v973 = vadd.f32 0.0, %v972
        %v974 = vpop.f32.mrf.mxu0
        %975 = vdwg.mxu0
        %976 = vrot.lane.b32.xlu0 %v726, 120
        %v977 = vpop.permute.xlu0 %976
        %978 = vrot.lane.b32.xlu0 %v811, 120
        %v979 = vpop.permute.xlu0 %978
        %v980 = vsel %vm899, %v977, 0
        %v982 = vsel %vm899, %v979, 0
        %984 = vmatprep.subr.mxu0 0.0
        %985 = vmatpush1.xpose.msra.mxu0 0.0
        %986 = vmatprep.subr.mxu0 0.0
        %987 = vmatpush1.xpose.msra.mxu0 0.0
        %988 = vmatprep.subr.mxu0 0.0
        %989 = vmatpush1.xpose.msra.mxu0 0.0
        %990 = vmatprep.subr.mxu0 0.0
        %991 = vmatpush1.xpose.msra.mxu0 0.0
        %992 = vmatprep.subr.mxu0 0.0
        %993 = vmatpush1.xpose.msra.mxu0 0.0
        %994 = vmatprep.subr.mxu0 0.0
        %995 = vmatpush1.xpose.msra.mxu0 0.0
        %996 = vmatprep.subr.mxu0 0.0
        %997 = vmatpush1.xpose.msra.mxu0 0.0
        %998 = vmatprep.subr.mxu0 0.0
        %999 = vmatpush1.xpose.msra.mxu0 0.0
        %1000 = vmatprep.subr.mxu0 0.0
        %1001 = vmatpush1.xpose.msra.mxu0 0.0
        %1002 = vmatprep.subr.mxu0 0.0
        %1003 = vmatpush1.xpose.msra.mxu0 0.0
        %1004 = vmatprep.subr.mxu0 0.0
        %1005 = vmatpush1.xpose.msra.mxu0 0.0
        %1006 = vmatprep.subr.mxu0 0.0
        %1007 = vmatpush1.xpose.msra.mxu0 0.0
        %1008 = vmatprep.subr.mxu0 0.0
        %1009 = vmatpush1.xpose.msra.mxu0 0.0
        %1010 = vmatprep.subr.mxu0 0.0
        %1011 = vmatpush1.xpose.msra.mxu0 0.0
        %1012 = vmatprep.subr.mxu0 0.0
        %1013 = vmatpush1.xpose.msra.mxu0 0.0
        %1014 = vmatprep.subr.mxu0 0.0
        %1015 = vmatpush1.xpose.msra.mxu0 %v982
        %1016 = vmatprep.subr.mxu0 0.0
        %1017 = vmatpush2.xpose.msra.mxu0 0.0
        %1018 = vmatprep.subr.mxu0 0.0
        %1019 = vmatpush2.xpose.msra.mxu0 0.0
        %1020 = vmatprep.subr.mxu0 0.0
        %1021 = vmatpush2.xpose.msra.mxu0 0.0
        %1022 = vmatprep.subr.mxu0 0.0
        %1023 = vmatpush2.xpose.msra.mxu0 0.0
        %1024 = vmatprep.subr.mxu0 0.0
        %1025 = vmatpush2.xpose.msra.mxu0 0.0
        %1026 = vmatprep.subr.mxu0 0.0
        %1027 = vmatpush2.xpose.msra.mxu0 0.0
        %1028 = vmatprep.subr.mxu0 0.0
        %1029 = vmatpush2.xpose.msra.mxu0 0.0
        %1030 = vmatprep.subr.mxu0 0.0
        %1031 = vmatpush2.xpose.msra.mxu0 0.0
        %1032 = vmatprep.subr.mxu0 0.0
        %1033 = vmatpush2.xpose.msra.mxu0 0.0
        %1034 = vmatprep.subr.mxu0 0.0
        %1035 = vmatpush2.xpose.msra.mxu0 0.0
        %1036 = vmatprep.subr.mxu0 0.0
        %1037 = vmatpush2.xpose.msra.mxu0 0.0
        %1038 = vmatprep.subr.mxu0 0.0
        %1039 = vmatpush2.xpose.msra.mxu0 0.0
        %1040 = vmatprep.subr.mxu0 0.0
        %1041 = vmatpush2.xpose.msra.mxu0 0.0
        %1042 = vmatprep.subr.mxu0 0.0
        %1043 = vmatpush2.xpose.msra.mxu0 0.0
        %1044 = vmatprep.subr.mxu0 0.0
        %1045 = vmatpush2.xpose.msra.mxu0 0.0
        %1046 = vmatprep.subr.mxu0 0.0
        %1047 = vmatpush2.xpose.msra.mxu0 0.0
        %1048 = vmatprep.mubr.f32.mxu0 0.0
        %1049 = vmatmul.mubr.f32.gmra.mxu0 %v980
        %v1050 = vpop.f32.mrf.mxu0
        %v1051 = vadd.f32 0.0, %v1050
        %v1052 = vpop.f32.mrf.mxu0
        %1053 = vdwg.mxu0
        %1054 = vrot.lane.b32.xlu0 %v726, 112
        %v1055 = vpop.permute.xlu0 %1054
        %1056 = vrot.lane.b32.xlu0 %v811, 112
        %v1057 = vpop.permute.xlu0 %1056
        %v1058 = vsel %vm899, %v1055, 0
        %v1060 = vsel %vm899, %v1057, 0
        %1062 = vmatprep.subr.mxu0 0.0
        %1063 = vmatpush1.xpose.msra.mxu0 0.0
        %1064 = vmatprep.subr.mxu0 0.0
        %1065 = vmatpush1.xpose.msra.mxu0 0.0
        %1066 = vmatprep.subr.mxu0 0.0
        %1067 = vmatpush1.xpose.msra.mxu0 0.0
        %1068 = vmatprep.subr.mxu0 0.0
        %1069 = vmatpush1.xpose.msra.mxu0 0.0
        %1070 = vmatprep.subr.mxu0 0.0
        %1071 = vmatpush1.xpose.msra.mxu0 0.0
        %1072 = vmatprep.subr.mxu0 0.0
        %1073 = vmatpush1.xpose.msra.mxu0 0.0
        %1074 = vmatprep.subr.mxu0 0.0
        %1075 = vmatpush1.xpose.msra.mxu0 0.0
        %1076 = vmatprep.subr.mxu0 0.0
        %1077 = vmatpush1.xpose.msra.mxu0 0.0
        %1078 = vmatprep.subr.mxu0 0.0
        %1079 = vmatpush1.xpose.msra.mxu0 0.0
        %1080 = vmatprep.subr.mxu0 0.0
        %1081 = vmatpush1.xpose.msra.mxu0 0.0
        %1082 = vmatprep.subr.mxu0 0.0
        %1083 = vmatpush1.xpose.msra.mxu0 0.0
        %1084 = vmatprep.subr.mxu0 0.0
        %1085 = vmatpush1.xpose.msra.mxu0 0.0
        %1086 = vmatprep.subr.mxu0 0.0
        %1087 = vmatpush1.xpose.msra.mxu0 0.0
        %1088 = vmatprep.subr.mxu0 0.0
        %1089 = vmatpush1.xpose.msra.mxu0 0.0
        %1090 = vmatprep.subr.mxu0 0.0
        %1091 = vmatpush1.xpose.msra.mxu0 0.0
        %1092 = vmatprep.subr.mxu0 0.0
        %1093 = vmatpush1.xpose.msra.mxu0 %v1060
        %1094 = vmatprep.subr.mxu0 0.0
        %1095 = vmatpush2.xpose.msra.mxu0 0.0
        %1096 = vmatprep.subr.mxu0 0.0
        %1097 = vmatpush2.xpose.msra.mxu0 0.0
        %1098 = vmatprep.subr.mxu0 0.0
        %1099 = vmatpush2.xpose.msra.mxu0 0.0
        %1100 = vmatprep.subr.mxu0 0.0
        %1101 = vmatpush2.xpose.msra.mxu0 0.0
        %1102 = vmatprep.subr.mxu0 0.0
        %1103 = vmatpush2.xpose.msra.mxu0 0.0
        %1104 = vmatprep.subr.mxu0 0.0
        %1105 = vmatpush2.xpose.msra.mxu0 0.0
        %1106 = vmatprep.subr.mxu0 0.0
        %1107 = vmatpush2.xpose.msra.mxu0 0.0
        %1108 = vmatprep.subr.mxu0 0.0
        %1109 = vmatpush2.xpose.msra.mxu0 0.0
        %1110 = vmatprep.subr.mxu0 0.0
        %1111 = vmatpush2.xpose.msra.mxu0 0.0
        %1112 = vmatprep.subr.mxu0 0.0
        %1113 = vmatpush2.xpose.msra.mxu0 0.0
        %1114 = vmatprep.subr.mxu0 0.0
        %1115 = vmatpush2.xpose.msra.mxu0 0.0
        %1116 = vmatprep.subr.mxu0 0.0
        %1117 = vmatpush2.xpose.msra.mxu0 0.0
        %1118 = vmatprep.subr.mxu0 0.0
        %1119 = vmatpush2.xpose.msra.mxu0 0.0
        %1120 = vmatprep.subr.mxu0 0.0
        %1121 = vmatpush2.xpose.msra.mxu0 0.0
        %1122 = vmatprep.subr.mxu0 0.0
        %1123 = vmatpush2.xpose.msra.mxu0 0.0
        %1124 = vmatprep.subr.mxu0 0.0
        %1125 = vmatpush2.xpose.msra.mxu0 0.0
        %1126 = vmatprep.mubr.f32.mxu0 0.0
        %1127 = vmatmul.mubr.f32.gmra.mxu0 %v1058
        %v1128 = vpop.f32.mrf.mxu0
        %v1129 = vadd.f32 0.0, %v1128
        %v1130 = vpop.f32.mrf.mxu0
        %1131 = vdwg.mxu0
        %1132 = vrot.lane.b32.xlu0 %v726, 104
        %v1133 = vpop.permute.xlu0 %1132
        %1134 = vrot.lane.b32.xlu0 %v811, 104
        %v1135 = vpop.permute.xlu0 %1134
        %v1136 = vsel %vm899, %v1133, 0
        %v1138 = vsel %vm899, %v1135, 0
        %1140 = vmatprep.subr.mxu0 0.0
        %1141 = vmatpush1.xpose.msra.mxu0 0.0
        %1142 = vmatprep.subr.mxu0 0.0
        %1143 = vmatpush1.xpose.msra.mxu0 0.0
        %1144 = vmatprep.subr.mxu0 0.0
        %1145 = vmatpush1.xpose.msra.mxu0 0.0
        %1146 = vmatprep.subr.mxu0 0.0
        %1147 = vmatpush1.xpose.msra.mxu0 0.0
        %1148 = vmatprep.subr.mxu0 0.0
        %1149 = vmatpush1.xpose.msra.mxu0 0.0
        %1150 = vmatprep.subr.mxu0 0.0
        %1151 = vmatpush1.xpose.msra.mxu0 0.0
        %1152 = vmatprep.subr.mxu0 0.0
        %1153 = vmatpush1.xpose.msra.mxu0 0.0
        %1154 = vmatprep.subr.mxu0 0.0
        %1155 = vmatpush1.xpose.msra.mxu0 0.0
        %1156 = vmatprep.subr.mxu0 0.0
        %1157 = vmatpush1.xpose.msra.mxu0 0.0
        %1158 = vmatprep.subr.mxu0 0.0
        %1159 = vmatpush1.xpose.msra.mxu0 0.0
        %1160 = vmatprep.subr.mxu0 0.0
        %1161 = vmatpush1.xpose.msra.mxu0 0.0
        %1162 = vmatprep.subr.mxu0 0.0
        %1163 = vmatpush1.xpose.msra.mxu0 0.0
        %1164 = vmatprep.subr.mxu0 0.0
        %1165 = vmatpush1.xpose.msra.mxu0 0.0
        %1166 = vmatprep.subr.mxu0 0.0
        %1167 = vmatpush1.xpose.msra.mxu0 0.0
        %1168 = vmatprep.subr.mxu0 0.0
        %1169 = vmatpush1.xpose.msra.mxu0 0.0
        %1170 = vmatprep.subr.mxu0 0.0
        %1171 = vmatpush1.xpose.msra.mxu0 %v1138
        %1172 = vmatprep.subr.mxu0 0.0
        %1173 = vmatpush2.xpose.msra.mxu0 0.0
        %1174 = vmatprep.subr.mxu0 0.0
        %1175 = vmatpush2.xpose.msra.mxu0 0.0
        %1176 = vmatprep.subr.mxu0 0.0
        %1177 = vmatpush2.xpose.msra.mxu0 0.0
        %1178 = vmatprep.subr.mxu0 0.0
        %1179 = vmatpush2.xpose.msra.mxu0 0.0
        %1180 = vmatprep.subr.mxu0 0.0
        %1181 = vmatpush2.xpose.msra.mxu0 0.0
        %1182 = vmatprep.subr.mxu0 0.0
        %1183 = vmatpush2.xpose.msra.mxu0 0.0
        %1184 = vmatprep.subr.mxu0 0.0
        %1185 = vmatpush2.xpose.msra.mxu0 0.0
        %1186 = vmatprep.subr.mxu0 0.0
        %1187 = vmatpush2.xpose.msra.mxu0 0.0
        %1188 = vmatprep.subr.mxu0 0.0
        %1189 = vmatpush2.xpose.msra.mxu0 0.0
        %1190 = vmatprep.subr.mxu0 0.0
        %1191 = vmatpush2.xpose.msra.mxu0 0.0
        %1192 = vmatprep.subr.mxu0 0.0
        %1193 = vmatpush2.xpose.msra.mxu0 0.0
        %1194 = vmatprep.subr.mxu0 0.0
        %1195 = vmatpush2.xpose.msra.mxu0 0.0
        %1196 = vmatprep.subr.mxu0 0.0
        %1197 = vmatpush2.xpose.msra.mxu0 0.0
        %1198 = vmatprep.subr.mxu0 0.0
        %1199 = vmatpush2.xpose.msra.mxu0 0.0
        %1200 = vmatprep.subr.mxu0 0.0
        %1201 = vmatpush2.xpose.msra.mxu0 0.0
        %1202 = vmatprep.subr.mxu0 0.0
        %1203 = vmatpush2.xpose.msra.mxu0 0.0
        %1204 = vmatprep.mubr.f32.mxu0 0.0
        %1205 = vmatmul.mubr.f32.gmra.mxu0 %v1136
        %v1206 = vpop.f32.mrf.mxu0
        %v1207 = vadd.f32 0.0, %v1206
        %v1208 = vpop.f32.mrf.mxu0
        %1209 = vdwg.mxu0
        %v1210 = vld [vmem:[%s642] sm:$0x3]
        %v1211 = vunpack.c.0.s8 %v1210
        %vm1212 = vcmp.eq.s32.totalorder %v1211, 0
        %v1213 = vsel %vm1212, 1, 0
        %vm1214 = vcmp.eq.s32.totalorder %v1213, 1
        %v1215 = vsel %vm1214, -1e+12, %v973
        %v1216 = vsel %vm1214, -1e+12, %v1051
        %v1217 = vsel %vm1214, -1e+12, %v1129
        %v1218 = vsel %vm1214, -1e+12, %v1207
        %v1219 = vsel %vm899, %v1215, -inf
        %1220 = vmax.xlane.f32.xlu0 %v1219
        %v1221 = vpop.xlane.xlu0 %1220
        %v1222 = vsel %vm899, %v1216, -inf
        %1223 = vmax.xlane.f32.xlu0 %v1222
        %v1224 = vpop.xlane.xlu0 %1223
        %v1225 = vsel %vm899, %v1217, -inf
        %1226 = vmax.xlane.f32.xlu0 %v1225
        %v1227 = vpop.xlane.xlu0 %1226
        %v1228 = vsel %vm899, %v1218, -inf
        %1229 = vmax.xlane.f32.xlu0 %v1228
        %v1230 = vpop.xlane.xlu0 %1229
        %v1231 = vsub.f32 %v1215, %v1221
        %v1232 = vsub.f32 %v1216, %v1224
        %v1233 = vsub.f32 %v1217, %v1227
        %v1234 = vsub.f32 %v1218, %v1230
        %v1235 = vmul.f32 %v1231, 1.442695
        %v1236 = vpow.pop %v1235
        %v1237 = vmul.f32 %v1232, 1.442695
        %v1238 = vpow.pop %v1237
        %v1239 = vmul.f32 %v1233, 1.442695
        %v1240 = vpow.pop %v1239
        %v1241 = vmul.f32 %v1234, 1.442695
        %v1242 = vpow.pop %v1241
        %v1243 = vsel %vm899, %v1236, 0.0
        %1244 = vadd.xlane.f32.xlu0 %v1243
        %v1245 = vpop.xlane.xlu0 %1244
        %v1246 = vsel %vm899, %v1238, 0.0
        %1247 = vadd.xlane.f32.xlu0 %v1246
        %v1248 = vpop.xlane.xlu0 %1247
        %v1249 = vsel %vm899, %v1240, 0.0
        %1250 = vadd.xlane.f32.xlu0 %v1249
        %v1251 = vpop.xlane.xlu0 %1250
        %v1252 = vsel %vm899, %v1242, 0.0
        %1253 = vadd.xlane.f32.xlu0 %v1252
        %v1254 = vpop.xlane.xlu0 %1253
        %v1255 = vrcp.pop %v1245
        %v1256 = vmul.f32 %v1236, %v1255
        %v1257 = vrcp.pop %v1248
        %v1258 = vmul.f32 %v1238, %v1257
        %v1259 = vrcp.pop %v1251
        %v1260 = vmul.f32 %v1240, %v1259
        %v1261 = vrcp.pop %v1254
        %v1262 = vmul.f32 %v1242, %v1261
        %1263 = vst.msk [vmem:[%s635] sm:$0xff] %vm899, %v1256
        %1264 = vst.msk [vmem:[%s635 + $0x8] sm:$0xff] %vm899, %v1258
        %1265 = vst.msk [vmem:[%s635 + $0x10] sm:$0xff] %vm899, %v1260
        %1266 = vst.msk [vmem:[%s635 + $0x18] sm:$0xff] %vm899, %v1262
        %v1267 = vld [vmem:[%s11] sm:$0x1]
        %v1269 = vlaneseq
        %v1270 = vshrl.u32 %v1269, 7
        %v1271 = vsub.s32 0, %v1270
        %v1272 = vrot.slane %v1267, %v1271
        %v1274 = vadd.f32 %v1272, 0.0
        %v1276 = vsel %vm899, %v1256, 0
        %1278 = vmatprep.subr.mxu0 0.0
        %1279 = vmatpush1.msra.mxu0 0.0
        %1280 = vmatprep.subr.mxu0 0.0
        %1281 = vmatpush1.msra.mxu0 0.0
        %1282 = vmatprep.subr.mxu0 0.0
        %1283 = vmatpush1.msra.mxu0 0.0
        %1284 = vmatprep.subr.mxu0 0.0
        %1285 = vmatpush1.msra.mxu0 0.0
        %1286 = vmatprep.subr.mxu0 0.0
        %1287 = vmatpush1.msra.mxu0 0.0
        %1288 = vmatprep.subr.mxu0 0.0
        %1289 = vmatpush1.msra.mxu0 0.0
        %1290 = vmatprep.subr.mxu0 0.0
        %1291 = vmatpush1.msra.mxu0 0.0
        %1292 = vmatprep.subr.mxu0 0.0
        %1293 = vmatpush1.msra.mxu0 0.0
        %1294 = vmatprep.subr.mxu0 0.0
        %1295 = vmatpush1.msra.mxu0 0.0
        %1296 = vmatprep.subr.mxu0 0.0
        %1297 = vmatpush1.msra.mxu0 0.0
        %1298 = vmatprep.subr.mxu0 0.0
        %1299 = vmatpush1.msra.mxu0 0.0
        %1300 = vmatprep.subr.mxu0 0.0
        %1301 = vmatpush1.msra.mxu0 0.0
        %1302 = vmatprep.subr.mxu0 0.0
        %1303 = vmatpush1.msra.mxu0 0.0
        %1304 = vmatprep.subr.mxu0 0.0
        %1305 = vmatpush1.msra.mxu0 0.0
        %1306 = vmatprep.subr.mxu0 0.0
        %1307 = vmatpush1.msra.mxu0 0.0
        %1308 = vmatprep.subr.mxu0 0.0
        %1309 = vmatpush1.msra.mxu0 %v896
        %1310 = vmatprep.subr.mxu0 0.0
        %1311 = vmatpush2.msra.mxu0 0.0
        %1312 = vmatprep.subr.mxu0 0.0
        %1313 = vmatpush2.msra.mxu0 0.0
        %1314 = vmatprep.subr.mxu0 0.0
        %1315 = vmatpush2.msra.mxu0 0.0
        %1316 = vmatprep.subr.mxu0 0.0
        %1317 = vmatpush2.msra.mxu0 0.0
        %1318 = vmatprep.subr.mxu0 0.0
        %1319 = vmatpush2.msra.mxu0 0.0
        %1320 = vmatprep.subr.mxu0 0.0
        %1321 = vmatpush2.msra.mxu0 0.0
        %1322 = vmatprep.subr.mxu0 0.0
        %1323 = vmatpush2.msra.mxu0 0.0
        %1324 = vmatprep.subr.mxu0 0.0
        %1325 = vmatpush2.msra.mxu0 0.0
        %1326 = vmatprep.subr.mxu0 0.0
        %1327 = vmatpush2.msra.mxu0 0.0
        %1328 = vmatprep.subr.mxu0 0.0
        %1329 = vmatpush2.msra.mxu0 0.0
        %1330 = vmatprep.subr.mxu0 0.0
        %1331 = vmatpush2.msra.mxu0 0.0
        %1332 = vmatprep.subr.mxu0 0.0
        %1333 = vmatpush2.msra.mxu0 0.0
        %1334 = vmatprep.subr.mxu0 0.0
        %1335 = vmatpush2.msra.mxu0 0.0
        %1336 = vmatprep.subr.mxu0 0.0
        %1337 = vmatpush2.msra.mxu0 0.0
        %1338 = vmatprep.subr.mxu0 0.0
        %1339 = vmatpush2.msra.mxu0 0.0
        %1340 = vmatprep.subr.mxu0 0.0
        %1341 = vmatpush2.msra.mxu0 0.0
        %1342 = vmatprep.mubr.f32.mxu0 0.0
        %1343 = vmatmul.mubr.f32.gmra.mxu0 %v1276
        %v1344 = vpop.f32.mrf.mxu0
        %v1345 = vadd.f32 0.0, %v1344
        %v1346 = vpop.f32.mrf.mxu0
        %1347 = vdwg.mxu0
        %v1348 = vld [vmem:[#allocation13] sm:$0xff]
        %v1350 = vsel %vm899, %v1345, 0
        %1352 = vmatprep.subr.mxu0 0.0
        %1353 = vmatpush1.msra.mxu0 0.0
        %1354 = vmatprep.subr.mxu0 0.0
        %1355 = vmatpush1.msra.mxu0 0.0
        %1356 = vmatprep.subr.mxu0 0.0
        %1357 = vmatpush1.msra.mxu0 0.0
        %1358 = vmatprep.subr.mxu0 0.0
        %1359 = vmatpush1.msra.mxu0 0.0
        %1360 = vmatprep.subr.mxu0 0.0
        %1361 = vmatpush1.msra.mxu0 0.0
        %1362 = vmatprep.subr.mxu0 0.0
        %1363 = vmatpush1.msra.mxu0 0.0
        %1364 = vmatprep.subr.mxu0 0.0
        %1365 = vmatpush1.msra.mxu0 0.0
        %1366 = vmatprep.subr.mxu0 0.0
        %1367 = vmatpush1.msra.mxu0 0.0
        %1368 = vmatprep.subr.mxu0 0.0
        %1369 = vmatpush1.msra.mxu0 0.0
        %1370 = vmatprep.subr.mxu0 0.0
        %1371 = vmatpush1.msra.mxu0 0.0
        %1372 = vmatprep.subr.mxu0 0.0
        %1373 = vmatpush1.msra.mxu0 0.0
        %1374 = vmatprep.subr.mxu0 0.0
        %1375 = vmatpush1.msra.mxu0 0.0
        %1376 = vmatprep.subr.mxu0 0.0
        %1377 = vmatpush1.msra.mxu0 0.0
        %1378 = vmatprep.subr.mxu0 0.0
        %1379 = vmatpush1.msra.mxu0 0.0
        %1380 = vmatprep.subr.mxu0 0.0
        %1381 = vmatpush1.msra.mxu0 0.0
        %1382 = vmatprep.subr.mxu0 0.0
        %1383 = vmatpush1.msra.mxu0 %v1348
        %1384 = vmatprep.subr.mxu0 0.0
        %1385 = vmatpush2.msra.mxu0 0.0
        %1386 = vmatprep.subr.mxu0 0.0
        %1387 = vmatpush2.msra.mxu0 0.0
        %1388 = vmatprep.subr.mxu0 0.0
        %1389 = vmatpush2.msra.mxu0 0.0
        %1390 = vmatprep.subr.mxu0 0.0
        %1391 = vmatpush2.msra.mxu0 0.0
        %1392 = vmatprep.subr.mxu0 0.0
        %1393 = vmatpush2.msra.mxu0 0.0
        %1394 = vmatprep.subr.mxu0 0.0
        %1395 = vmatpush2.msra.mxu0 0.0
        %1396 = vmatprep.subr.mxu0 0.0
        %1397 = vmatpush2.msra.mxu0 0.0
        %1398 = vmatprep.subr.mxu0 0.0
        %1399 = vmatpush2.msra.mxu0 0.0
        %1400 = vmatprep.subr.mxu0 0.0
        %1401 = vmatpush2.msra.mxu0 0.0
        %1402 = vmatprep.subr.mxu0 0.0
        %1403 = vmatpush2.msra.mxu0 0.0
        %1404 = vmatprep.subr.mxu0 0.0
        %1405 = vmatpush2.msra.mxu0 0.0
        %1406 = vmatprep.subr.mxu0 0.0
        %1407 = vmatpush2.msra.mxu0 0.0
        %1408 = vmatprep.subr.mxu0 0.0
        %1409 = vmatpush2.msra.mxu0 0.0
        %1410 = vmatprep.subr.mxu0 0.0
        %1411 = vmatpush2.msra.mxu0 0.0
        %1412 = vmatprep.subr.mxu0 0.0
        %1413 = vmatpush2.msra.mxu0 0.0
        %1414 = vmatprep.subr.mxu0 0.0
        %1415 = vmatpush2.msra.mxu0 0.0
        %1416 = vmatprep.mubr.f32.mxu0 0.0
        %1417 = vmatmul.mubr.f32.gmra.mxu0 %v1350
        %v1418 = vpop.f32.mrf.mxu0
        %v1419 = vadd.f32 0.0, %v1418
        %v1420 = vpop.f32.mrf.mxu0
        %1421 = vdwg.mxu0
        %v1422 = vadd.f32 %v1274, %v1419
        %1424 = vrot.lane.b32.xlu0 %v896, 120
        %v1425 = vpop.permute.xlu0 %1424
        %v1428 = vsel %vm899, %v1258, 0
        %1430 = vmatprep.subr.mxu0 0.0
        %1431 = vmatpush1.msra.mxu0 0.0
        %1432 = vmatprep.subr.mxu0 0.0
        %1433 = vmatpush1.msra.mxu0 0.0
        %1434 = vmatprep.subr.mxu0 0.0
        %1435 = vmatpush1.msra.mxu0 0.0
        %1436 = vmatprep.subr.mxu0 0.0
        %1437 = vmatpush1.msra.mxu0 0.0
        %1438 = vmatprep.subr.mxu0 0.0
        %1439 = vmatpush1.msra.mxu0 0.0
        %1440 = vmatprep.subr.mxu0 0.0
        %1441 = vmatpush1.msra.mxu0 0.0
        %1442 = vmatprep.subr.mxu0 0.0
        %1443 = vmatpush1.msra.mxu0 0.0
        %1444 = vmatprep.subr.mxu0 0.0
        %1445 = vmatpush1.msra.mxu0 0.0
        %1446 = vmatprep.subr.mxu0 0.0
        %1447 = vmatpush1.msra.mxu0 0.0
        %1448 = vmatprep.subr.mxu0 0.0
        %1449 = vmatpush1.msra.mxu0 0.0
        %1450 = vmatprep.subr.mxu0 0.0
        %1451 = vmatpush1.msra.mxu0 0.0
        %1452 = vmatprep.subr.mxu0 0.0
        %1453 = vmatpush1.msra.mxu0 0.0
        %1454 = vmatprep.subr.mxu0 0.0
        %1455 = vmatpush1.msra.mxu0 0.0
        %1456 = vmatprep.subr.mxu0 0.0
        %1457 = vmatpush1.msra.mxu0 0.0
        %1458 = vmatprep.subr.mxu0 0.0
        %1459 = vmatpush1.msra.mxu0 0.0
        %1460 = vmatprep.subr.mxu0 0.0
        %1461 = vmatpush1.msra.mxu0 %v1425
        %1462 = vmatprep.subr.mxu0 0.0
        %1463 = vmatpush2.msra.mxu0 0.0
        %1464 = vmatprep.subr.mxu0 0.0
        %1465 = vmatpush2.msra.mxu0 0.0
        %1466 = vmatprep.subr.mxu0 0.0
        %1467 = vmatpush2.msra.mxu0 0.0
        %1468 = vmatprep.subr.mxu0 0.0
        %1469 = vmatpush2.msra.mxu0 0.0
        %1470 = vmatprep.subr.mxu0 0.0
        %1471 = vmatpush2.msra.mxu0 0.0
        %1472 = vmatprep.subr.mxu0 0.0
        %1473 = vmatpush2.msra.mxu0 0.0
        %1474 = vmatprep.subr.mxu0 0.0
        %1475 = vmatpush2.msra.mxu0 0.0
        %1476 = vmatprep.subr.mxu0 0.0
        %1477 = vmatpush2.msra.mxu0 0.0
        %1478 = vmatprep.subr.mxu0 0.0
        %1479 = vmatpush2.msra.mxu0 0.0
        %1480 = vmatprep.subr.mxu0 0.0
        %1481 = vmatpush2.msra.mxu0 0.0
        %1482 = vmatprep.subr.mxu0 0.0
        %1483 = vmatpush2.msra.mxu0 0.0
        %1484 = vmatprep.subr.mxu0 0.0
        %1485 = vmatpush2.msra.mxu0 0.0
        %1486 = vmatprep.subr.mxu0 0.0
        %1487 = vmatpush2.msra.mxu0 0.0
        %1488 = vmatprep.subr.mxu0 0.0
        %1489 = vmatpush2.msra.mxu0 0.0
        %1490 = vmatprep.subr.mxu0 0.0
        %1491 = vmatpush2.msra.mxu0 0.0
        %1492 = vmatprep.subr.mxu0 0.0
        %1493 = vmatpush2.msra.mxu0 0.0
        %1494 = vmatprep.mubr.f32.mxu0 0.0
        %1495 = vmatmul.mubr.f32.gmra.mxu0 %v1428
        %v1496 = vpop.f32.mrf.mxu0
        %v1497 = vadd.f32 0.0, %v1496
        %v1498 = vpop.f32.mrf.mxu0
        %1499 = vdwg.mxu0
        %v1500 = vld [vmem:[#allocation13 + $0x8] sm:$0xff]
        %v1502 = vsel %vm899, %v1497, 0
        %1504 = vmatprep.subr.mxu0 0.0
        %1505 = vmatpush1.msra.mxu0 0.0
        %1506 = vmatprep.subr.mxu0 0.0
        %1507 = vmatpush1.msra.mxu0 0.0
        %1508 = vmatprep.subr.mxu0 0.0
        %1509 = vmatpush1.msra.mxu0 0.0
        %1510 = vmatprep.subr.mxu0 0.0
        %1511 = vmatpush1.msra.mxu0 0.0
        %1512 = vmatprep.subr.mxu0 0.0
        %1513 = vmatpush1.msra.mxu0 0.0
        %1514 = vmatprep.subr.mxu0 0.0
        %1515 = vmatpush1.msra.mxu0 0.0
        %1516 = vmatprep.subr.mxu0 0.0
        %1517 = vmatpush1.msra.mxu0 0.0
        %1518 = vmatprep.subr.mxu0 0.0
        %1519 = vmatpush1.msra.mxu0 0.0
        %1520 = vmatprep.subr.mxu0 0.0
        %1521 = vmatpush1.msra.mxu0 0.0
        %1522 = vmatprep.subr.mxu0 0.0
        %1523 = vmatpush1.msra.mxu0 0.0
        %1524 = vmatprep.subr.mxu0 0.0
        %1525 = vmatpush1.msra.mxu0 0.0
        %1526 = vmatprep.subr.mxu0 0.0
        %1527 = vmatpush1.msra.mxu0 0.0
        %1528 = vmatprep.subr.mxu0 0.0
        %1529 = vmatpush1.msra.mxu0 0.0
        %1530 = vmatprep.subr.mxu0 0.0
        %1531 = vmatpush1.msra.mxu0 0.0
        %1532 = vmatprep.subr.mxu0 0.0
        %1533 = vmatpush1.msra.mxu0 0.0
        %1534 = vmatprep.subr.mxu0 0.0
        %1535 = vmatpush1.msra.mxu0 %v1500
        %1536 = vmatprep.subr.mxu0 0.0
        %1537 = vmatpush2.msra.mxu0 0.0
        %1538 = vmatprep.subr.mxu0 0.0
        %1539 = vmatpush2.msra.mxu0 0.0
        %1540 = vmatprep.subr.mxu0 0.0
        %1541 = vmatpush2.msra.mxu0 0.0
        %1542 = vmatprep.subr.mxu0 0.0
        %1543 = vmatpush2.msra.mxu0 0.0
        %1544 = vmatprep.subr.mxu0 0.0
        %1545 = vmatpush2.msra.mxu0 0.0
        %1546 = vmatprep.subr.mxu0 0.0
        %1547 = vmatpush2.msra.mxu0 0.0
        %1548 = vmatprep.subr.mxu0 0.0
        %1549 = vmatpush2.msra.mxu0 0.0
        %1550 = vmatprep.subr.mxu0 0.0
        %1551 = vmatpush2.msra.mxu0 0.0
        %1552 = vmatprep.subr.mxu0 0.0
        %1553 = vmatpush2.msra.mxu0 0.0
        %1554 = vmatprep.subr.mxu0 0.0
        %1555 = vmatpush2.msra.mxu0 0.0
        %1556 = vmatprep.subr.mxu0 0.0
        %1557 = vmatpush2.msra.mxu0 0.0
        %1558 = vmatprep.subr.mxu0 0.0
        %1559 = vmatpush2.msra.mxu0 0.0
        %1560 = vmatprep.subr.mxu0 0.0
        %1561 = vmatpush2.msra.mxu0 0.0
        %1562 = vmatprep.subr.mxu0 0.0
        %1563 = vmatpush2.msra.mxu0 0.0
        %1564 = vmatprep.subr.mxu0 0.0
        %1565 = vmatpush2.msra.mxu0 0.0
        %1566 = vmatprep.subr.mxu0 0.0
        %1567 = vmatpush2.msra.mxu0 0.0
        %1568 = vmatprep.mubr.f32.mxu0 0.0
        %1569 = vmatmul.mubr.f32.gmra.mxu0 %v1502
        %v1570 = vpop.f32.mrf.mxu0
        %v1571 = vadd.f32 0.0, %v1570
        %v1572 = vpop.f32.mrf.mxu0
        %1573 = vdwg.mxu0
        %v1574 = vadd.f32 %v1422, %v1571
        %1575 = vrot.lane.b32.xlu0 %v896, 112
        %v1576 = vpop.permute.xlu0 %1575
        %v1579 = vsel %vm899, %v1260, 0
        %1581 = vmatprep.subr.mxu0 0.0
        %1582 = vmatpush1.msra.mxu0 0.0
        %1583 = vmatprep.subr.mxu0 0.0
        %1584 = vmatpush1.msra.mxu0 0.0
        %1585 = vmatprep.subr.mxu0 0.0
        %1586 = vmatpush1.msra.mxu0 0.0
        %1587 = vmatprep.subr.mxu0 0.0
        %1588 = vmatpush1.msra.mxu0 0.0
        %1589 = vmatprep.subr.mxu0 0.0
        %1590 = vmatpush1.msra.mxu0 0.0
        %1591 = vmatprep.subr.mxu0 0.0
        %1592 = vmatpush1.msra.mxu0 0.0
        %1593 = vmatprep.subr.mxu0 0.0
        %1594 = vmatpush1.msra.mxu0 0.0
        %1595 = vmatprep.subr.mxu0 0.0
        %1596 = vmatpush1.msra.mxu0 0.0
        %1597 = vmatprep.subr.mxu0 0.0
        %1598 = vmatpush1.msra.mxu0 0.0
        %1599 = vmatprep.subr.mxu0 0.0
        %1600 = vmatpush1.msra.mxu0 0.0
        %1601 = vmatprep.subr.mxu0 0.0
        %1602 = vmatpush1.msra.mxu0 0.0
        %1603 = vmatprep.subr.mxu0 0.0
        %1604 = vmatpush1.msra.mxu0 0.0
        %1605 = vmatprep.subr.mxu0 0.0
        %1606 = vmatpush1.msra.mxu0 0.0
        %1607 = vmatprep.subr.mxu0 0.0
        %1608 = vmatpush1.msra.mxu0 0.0
        %1609 = vmatprep.subr.mxu0 0.0
        %1610 = vmatpush1.msra.mxu0 0.0
        %1611 = vmatprep.subr.mxu0 0.0
        %1612 = vmatpush1.msra.mxu0 %v1576
        %1613 = vmatprep.subr.mxu0 0.0
        %1614 = vmatpush2.msra.mxu0 0.0
        %1615 = vmatprep.subr.mxu0 0.0
        %1616 = vmatpush2.msra.mxu0 0.0
        %1617 = vmatprep.subr.mxu0 0.0
        %1618 = vmatpush2.msra.mxu0 0.0
        %1619 = vmatprep.subr.mxu0 0.0
        %1620 = vmatpush2.msra.mxu0 0.0
        %1621 = vmatprep.subr.mxu0 0.0
        %1622 = vmatpush2.msra.mxu0 0.0
        %1623 = vmatprep.subr.mxu0 0.0
        %1624 = vmatpush2.msra.mxu0 0.0
        %1625 = vmatprep.subr.mxu0 0.0
        %1626 = vmatpush2.msra.mxu0 0.0
        %1627 = vmatprep.subr.mxu0 0.0
        %1628 = vmatpush2.msra.mxu0 0.0
        %1629 = vmatprep.subr.mxu0 0.0
        %1630 = vmatpush2.msra.mxu0 0.0
        %1631 = vmatprep.subr.mxu0 0.0
        %1632 = vmatpush2.msra.mxu0 0.0
        %1633 = vmatprep.subr.mxu0 0.0
        %1634 = vmatpush2.msra.mxu0 0.0
        %1635 = vmatprep.subr.mxu0 0.0
        %1636 = vmatpush2.msra.mxu0 0.0
        %1637 = vmatprep.subr.mxu0 0.0
        %1638 = vmatpush2.msra.mxu0 0.0
        %1639 = vmatprep.subr.mxu0 0.0
        %1640 = vmatpush2.msra.mxu0 0.0
        %1641 = vmatprep.subr.mxu0 0.0
        %1642 = vmatpush2.msra.mxu0 0.0
        %1643 = vmatprep.subr.mxu0 0.0
        %1644 = vmatpush2.msra.mxu0 0.0
        %1645 = vmatprep.mubr.f32.mxu0 0.0
        %1646 = vmatmul.mubr.f32.gmra.mxu0 %v1579
        %v1647 = vpop.f32.mrf.mxu0
        %v1648 = vadd.f32 0.0, %v1647
        %v1649 = vpop.f32.mrf.mxu0
        %1650 = vdwg.mxu0
        %v1651 = vld [vmem:[#allocation13 + $0x10] sm:$0xff]
        %v1653 = vsel %vm899, %v1648, 0
        %1655 = vmatprep.subr.mxu0 0.0
        %1656 = vmatpush1.msra.mxu0 0.0
        %1657 = vmatprep.subr.mxu0 0.0
        %1658 = vmatpush1.msra.mxu0 0.0
        %1659 = vmatprep.subr.mxu0 0.0
        %1660 = vmatpush1.msra.mxu0 0.0
        %1661 = vmatprep.subr.mxu0 0.0
        %1662 = vmatpush1.msra.mxu0 0.0
        %1663 = vmatprep.subr.mxu0 0.0
        %1664 = vmatpush1.msra.mxu0 0.0
        %1665 = vmatprep.subr.mxu0 0.0
        %1666 = vmatpush1.msra.mxu0 0.0
        %1667 = vmatprep.subr.mxu0 0.0
        %1668 = vmatpush1.msra.mxu0 0.0
        %1669 = vmatprep.subr.mxu0 0.0
        %1670 = vmatpush1.msra.mxu0 0.0
        %1671 = vmatprep.subr.mxu0 0.0
        %1672 = vmatpush1.msra.mxu0 0.0
        %1673 = vmatprep.subr.mxu0 0.0
        %1674 = vmatpush1.msra.mxu0 0.0
        %1675 = vmatprep.subr.mxu0 0.0
        %1676 = vmatpush1.msra.mxu0 0.0
        %1677 = vmatprep.subr.mxu0 0.0
        %1678 = vmatpush1.msra.mxu0 0.0
        %1679 = vmatprep.subr.mxu0 0.0
        %1680 = vmatpush1.msra.mxu0 0.0
        %1681 = vmatprep.subr.mxu0 0.0
        %1682 = vmatpush1.msra.mxu0 0.0
        %1683 = vmatprep.subr.mxu0 0.0
        %1684 = vmatpush1.msra.mxu0 0.0
        %1685 = vmatprep.subr.mxu0 0.0
        %1686 = vmatpush1.msra.mxu0 %v1651
        %1687 = vmatprep.subr.mxu0 0.0
        %1688 = vmatpush2.msra.mxu0 0.0
        %1689 = vmatprep.subr.mxu0 0.0
        %1690 = vmatpush2.msra.mxu0 0.0
        %1691 = vmatprep.subr.mxu0 0.0
        %1692 = vmatpush2.msra.mxu0 0.0
        %1693 = vmatprep.subr.mxu0 0.0
        %1694 = vmatpush2.msra.mxu0 0.0
        %1695 = vmatprep.subr.mxu0 0.0
        %1696 = vmatpush2.msra.mxu0 0.0
        %1697 = vmatprep.subr.mxu0 0.0
        %1698 = vmatpush2.msra.mxu0 0.0
        %1699 = vmatprep.subr.mxu0 0.0
        %1700 = vmatpush2.msra.mxu0 0.0
        %1701 = vmatprep.subr.mxu0 0.0
        %1702 = vmatpush2.msra.mxu0 0.0
        %1703 = vmatprep.subr.mxu0 0.0
        %1704 = vmatpush2.msra.mxu0 0.0
        %1705 = vmatprep.subr.mxu0 0.0
        %1706 = vmatpush2.msra.mxu0 0.0
        %1707 = vmatprep.subr.mxu0 0.0
        %1708 = vmatpush2.msra.mxu0 0.0
        %1709 = vmatprep.subr.mxu0 0.0
        %1710 = vmatpush2.msra.mxu0 0.0
        %1711 = vmatprep.subr.mxu0 0.0
        %1712 = vmatpush2.msra.mxu0 0.0
        %1713 = vmatprep.subr.mxu0 0.0
        %1714 = vmatpush2.msra.mxu0 0.0
        %1715 = vmatprep.subr.mxu0 0.0
        %1716 = vmatpush2.msra.mxu0 0.0
        %1717 = vmatprep.subr.mxu0 0.0
        %1718 = vmatpush2.msra.mxu0 0.0
        %1719 = vmatprep.mubr.f32.mxu0 0.0
        %1720 = vmatmul.mubr.f32.gmra.mxu0 %v1653
        %v1721 = vpop.f32.mrf.mxu0
        %v1722 = vadd.f32 0.0, %v1721
        %v1723 = vpop.f32.mrf.mxu0
        %1724 = vdwg.mxu0
        %v1725 = vadd.f32 %v1574, %v1722
        %1726 = vrot.lane.b32.xlu0 %v896, 104
        %v1727 = vpop.permute.xlu0 %1726
        %v1730 = vsel %vm899, %v1262, 0
        %1732 = vmatprep.subr.mxu0 0.0
        %1733 = vmatpush1.msra.mxu0 0.0
        %1734 = vmatprep.subr.mxu0 0.0
        %1735 = vmatpush1.msra.mxu0 0.0
        %1736 = vmatprep.subr.mxu0 0.0
        %1737 = vmatpush1.msra.mxu0 0.0
        %1738 = vmatprep.subr.mxu0 0.0
        %1739 = vmatpush1.msra.mxu0 0.0
        %1740 = vmatprep.subr.mxu0 0.0
        %1741 = vmatpush1.msra.mxu0 0.0
        %1742 = vmatprep.subr.mxu0 0.0
        %1743 = vmatpush1.msra.mxu0 0.0
        %1744 = vmatprep.subr.mxu0 0.0
        %1745 = vmatpush1.msra.mxu0 0.0
        %1746 = vmatprep.subr.mxu0 0.0
        %1747 = vmatpush1.msra.mxu0 0.0
        %1748 = vmatprep.subr.mxu0 0.0
        %1749 = vmatpush1.msra.mxu0 0.0
        %1750 = vmatprep.subr.mxu0 0.0
        %1751 = vmatpush1.msra.mxu0 0.0
        %1752 = vmatprep.subr.mxu0 0.0
        %1753 = vmatpush1.msra.mxu0 0.0
        %1754 = vmatprep.subr.mxu0 0.0
        %1755 = vmatpush1.msra.mxu0 0.0
        %1756 = vmatprep.subr.mxu0 0.0
        %1757 = vmatpush1.msra.mxu0 0.0
        %1758 = vmatprep.subr.mxu0 0.0
        %1759 = vmatpush1.msra.mxu0 0.0
        %1760 = vmatprep.subr.mxu0 0.0
        %1761 = vmatpush1.msra.mxu0 0.0
        %1762 = vmatprep.subr.mxu0 0.0
        %1763 = vmatpush1.msra.mxu0 %v1727
        %1764 = vmatprep.subr.mxu0 0.0
        %1765 = vmatpush2.msra.mxu0 0.0
        %1766 = vmatprep.subr.mxu0 0.0
        %1767 = vmatpush2.msra.mxu0 0.0
        %1768 = vmatprep.subr.mxu0 0.0
        %1769 = vmatpush2.msra.mxu0 0.0
        %1770 = vmatprep.subr.mxu0 0.0
        %1771 = vmatpush2.msra.mxu0 0.0
        %1772 = vmatprep.subr.mxu0 0.0
        %1773 = vmatpush2.msra.mxu0 0.0
        %1774 = vmatprep.subr.mxu0 0.0
        %1775 = vmatpush2.msra.mxu0 0.0
        %1776 = vmatprep.subr.mxu0 0.0
        %1777 = vmatpush2.msra.mxu0 0.0
        %1778 = vmatprep.subr.mxu0 0.0
        %1779 = vmatpush2.msra.mxu0 0.0
        %1780 = vmatprep.subr.mxu0 0.0
        %1781 = vmatpush2.msra.mxu0 0.0
        %1782 = vmatprep.subr.mxu0 0.0
        %1783 = vmatpush2.msra.mxu0 0.0
        %1784 = vmatprep.subr.mxu0 0.0
        %1785 = vmatpush2.msra.mxu0 0.0
        %1786 = vmatprep.subr.mxu0 0.0
        %1787 = vmatpush2.msra.mxu0 0.0
        %1788 = vmatprep.subr.mxu0 0.0
        %1789 = vmatpush2.msra.mxu0 0.0
        %1790 = vmatprep.subr.mxu0 0.0
        %1791 = vmatpush2.msra.mxu0 0.0
        %1792 = vmatprep.subr.mxu0 0.0
        %1793 = vmatpush2.msra.mxu0 0.0
        %1794 = vmatprep.subr.mxu0 0.0
        %1795 = vmatpush2.msra.mxu0 0.0
        %1796 = vmatprep.mubr.f32.mxu0 0.0
        %1797 = vmatmul.mubr.f32.gmra.mxu0 %v1730
        %v1798 = vpop.f32.mrf.mxu0
        %v1799 = vadd.f32 0.0, %v1798
        %v1800 = vpop.f32.mrf.mxu0
        %1801 = vdwg.mxu0
        %v1802 = vld [vmem:[#allocation13 + $0x18] sm:$0xff]
        %v1804 = vsel %vm899, %v1799, 0
        %1806 = vmatprep.subr.mxu0 0.0
        %1807 = vmatpush1.msra.mxu0 0.0
        %1808 = vmatprep.subr.mxu0 0.0
        %1809 = vmatpush1.msra.mxu0 0.0
        %1810 = vmatprep.subr.mxu0 0.0
        %1811 = vmatpush1.msra.mxu0 0.0
        %1812 = vmatprep.subr.mxu0 0.0
        %1813 = vmatpush1.msra.mxu0 0.0
        %1814 = vmatprep.subr.mxu0 0.0
        %1815 = vmatpush1.msra.mxu0 0.0
        %1816 = vmatprep.subr.mxu0 0.0
        %1817 = vmatpush1.msra.mxu0 0.0
        %1818 = vmatprep.subr.mxu0 0.0
        %1819 = vmatpush1.msra.mxu0 0.0
        %1820 = vmatprep.subr.mxu0 0.0
        %1821 = vmatpush1.msra.mxu0 0.0
        %1822 = vmatprep.subr.mxu0 0.0
        %1823 = vmatpush1.msra.mxu0 0.0
        %1824 = vmatprep.subr.mxu0 0.0
        %1825 = vmatpush1.msra.mxu0 0.0
        %1826 = vmatprep.subr.mxu0 0.0
        %1827 = vmatpush1.msra.mxu0 0.0
        %1828 = vmatprep.subr.mxu0 0.0
        %1829 = vmatpush1.msra.mxu0 0.0
        %1830 = vmatprep.subr.mxu0 0.0
        %1831 = vmatpush1.msra.mxu0 0.0
        %1832 = vmatprep.subr.mxu0 0.0
        %1833 = vmatpush1.msra.mxu0 0.0
        %1834 = vmatprep.subr.mxu0 0.0
        %1835 = vmatpush1.msra.mxu0 0.0
        %1836 = vmatprep.subr.mxu0 0.0
        %1837 = vmatpush1.msra.mxu0 %v1802
        %1838 = vmatprep.subr.mxu0 0.0
        %1839 = vmatpush2.msra.mxu0 0.0
        %1840 = vmatprep.subr.mxu0 0.0
        %1841 = vmatpush2.msra.mxu0 0.0
        %1842 = vmatprep.subr.mxu0 0.0
        %1843 = vmatpush2.msra.mxu0 0.0
        %1844 = vmatprep.subr.mxu0 0.0
        %1845 = vmatpush2.msra.mxu0 0.0
        %1846 = vmatprep.subr.mxu0 0.0
        %1847 = vmatpush2.msra.mxu0 0.0
        %1848 = vmatprep.subr.mxu0 0.0
        %1849 = vmatpush2.msra.mxu0 0.0
        %1850 = vmatprep.subr.mxu0 0.0
        %1851 = vmatpush2.msra.mxu0 0.0
        %1852 = vmatprep.subr.mxu0 0.0
        %1853 = vmatpush2.msra.mxu0 0.0
        %1854 = vmatprep.subr.mxu0 0.0
        %1855 = vmatpush2.msra.mxu0 0.0
        %1856 = vmatprep.subr.mxu0 0.0
        %1857 = vmatpush2.msra.mxu0 0.0
        %1858 = vmatprep.subr.mxu0 0.0
        %1859 = vmatpush2.msra.mxu0 0.0
        %1860 = vmatprep.subr.mxu0 0.0
        %1861 = vmatpush2.msra.mxu0 0.0
        %1862 = vmatprep.subr.mxu0 0.0
        %1863 = vmatpush2.msra.mxu0 0.0
        %1864 = vmatprep.subr.mxu0 0.0
        %1865 = vmatpush2.msra.mxu0 0.0
        %1866 = vmatprep.subr.mxu0 0.0
        %1867 = vmatpush2.msra.mxu0 0.0
        %1868 = vmatprep.subr.mxu0 0.0
        %1869 = vmatpush2.msra.mxu0 0.0
        %1870 = vmatprep.mubr.f32.mxu0 0.0
        %1871 = vmatmul.mubr.f32.gmra.mxu0 %v1804
        %v1872 = vpop.f32.mrf.mxu0
        %v1873 = vadd.f32 0.0, %v1872
        %v1874 = vpop.f32.mrf.mxu0
        %1875 = vdwg.mxu0
        %v1876 = vadd.f32 %v1725, %v1873
        %1877 = vst.msk [vmem:[%s628] sm:$0xff] %vm655, %v1876
        %s1878 = sand.u32 %s337, 1
        %s1879 = scalar_lea.sflag [#allocation4], %s1878
        %s1880 = sand.u32 %s337, 1
        %s1881 = smul.addr %s1880, 8
        %s1882 = scalar_lea.vmem [#allocation14], %s1881
        %s1883 = sand.u32 %s365, 1
        %s1884 = scalar_lea.sflag [#allocation16], %s1883
        %s1885 = sand.u32 %s365, 1
        %s1886 = smul.addr %s1885, 32
        %s1887 = scalar_lea.vmem [#allocation15], %s1886
        // Predicated region
        $region97: #{tpu_custom_call.1} parent=67 // pred_check
          %p1888 = pneg %p347
        $region98: #{tpu_custom_call.1} parent=67 // pred_check_branch
          %1890 = sbr.rel (%p1888) target = $region100
        $region99: #{tpu_custom_call.1} parent=67 // pred_region
          %s1892 = ssub.s32 128, 128
          %1893 = vsyncadd %s1879, %s1892
          %s1894 = sadd.s32 %s44, %s43
          %s1895 = smul.addr %s1894, 128
          %s1896 = scalar_lea.hbm %s12, %s1895
          %s1898 = sshll.u32 %s1882, 4
          %s1899 = int_to_ptr.vmem [resolvable:$true] %s1898
          %1901 = dma.vmem_to_hbm [thread:$0]  %s1899, 128, %s1896, %s1879
        $region100: #{tpu_custom_call.1} parent=67 // pred_fallthru
          _
        // Predicated region
        $region101: #{tpu_custom_call.1} parent=67 // pred_check
          %p1902 = pneg %p375
        $region102: #{tpu_custom_call.1} parent=67 // pred_check_branch
          %1904 = sbr.rel (%p1902) target = $region104
        $region103: #{tpu_custom_call.1} parent=67 // pred_region
          %s1906 = ssub.s32 512, 512
          %1907 = vsyncadd %s1884, %s1906
          %s1908 = smul.addr %s43, 4
          %s1909 = sadd.s32 %s44, %s1908
          %s1910 = smul.addr %s1909, 128
          %s1911 = scalar_lea.hbm %s13, %s1910
          %s1912 = sshll.u32 %s1887, 4
          %s1913 = int_to_ptr.vmem [resolvable:$true] %s1912
          %1918 = dma.vmem_to_hbm [thread:$0]  %s1913, 512, %s1911, %s1884, 128, 128, 8
        $region104: #{tpu_custom_call.1} parent=67 // pred_fallthru
          _
      $region68: #{tpu_custom_call.1} parent=5 // pred_fallthru
        _
      %p1919 = scmp.le.s32.totalorder 2, %s34
      // Predicated region
      $region105: #{tpu_custom_call.1} parent=5 // pred_check
        %p1920 = pneg %p1919
      $region106: #{tpu_custom_call.1} parent=5 // pred_check_branch
        %1922 = sbr.rel (%p1920) target = $region108
      $region107: #{tpu_custom_call.1} parent=5 // pred_region
        %s1923 = ssub.s32 %s34, 2
        // Predicated region
        $region109: #{tpu_custom_call.1} parent=107 // pred_check
          %p1924 = pneg %p353
        $region110: #{tpu_custom_call.1} parent=107 // pred_check_branch
          %1926 = sbr.rel (%p1924) target = $region112
        $region111: #{tpu_custom_call.1} parent=107 // pred_region
          %s1927 = sand.u32 %s338, 1
          %s1928 = scalar_lea.sflag [#allocation4], %s1927
          %s1929 = sand.u32 %s338, 1
          %s1930 = smul.addr %s1929, 8
          %s1931 = scalar_lea.vmem [#allocation14], %s1930
          %1932 = dma.done %s1928, 128
        $region112: #{tpu_custom_call.1} parent=107 // pred_fallthru
          _
        // Predicated region
        $region113: #{tpu_custom_call.1} parent=107 // pred_check
          %p1933 = pneg %p381
        $region114: #{tpu_custom_call.1} parent=107 // pred_check_branch
          %1935 = sbr.rel (%p1933) target = $region116
        $region115: #{tpu_custom_call.1} parent=107 // pred_region
          %s1936 = sand.u32 %s366, 1
          %s1937 = scalar_lea.sflag [#allocation16], %s1936
          %s1938 = sand.u32 %s366, 1
          %s1939 = smul.addr %s1938, 32
          %s1940 = scalar_lea.vmem [#allocation15], %s1939
          %1941 = dma.done %s1937, 512
        $region116: #{tpu_custom_call.1} parent=107 // pred_fallthru
          _
      $region108: #{tpu_custom_call.1} parent=5 // pred_fallthru
        _
    $region6: #{tpu_custom_call.1} parent=1 // loop_footer
      %s38 = sadd.s32 1, %s34
    $region7: #{tpu_custom_call.1} parent=1 // loop_footer_branch
      %33 = sbr.rel target = $region3
    $region8: #{tpu_custom_call.1} parent=1 // loop_exit
      _
    %1942 = vsyncpa [#allocation3], 1
    %s1943 = scalar_lea.sflag [#allocation3], 1
    %1944 = vsyncpa %s1943, 1
    %1945 = vsyncpa [#allocation6], 1
    %s1946 = scalar_lea.sflag [#allocation6], 1
    %1947 = vsyncpa %s1946, 1
    %1948 = vsyncpa [#allocation9], 1
    %1949 = vsyncpa [#allocation12], 1
    %1950 = vsyncpa [#allocation4], 1
    %s1951 = scalar_lea.sflag [#allocation4], 1
    %1952 = vsyncpa %s1951, 1
    %1953 = vsyncpa [#allocation16], 1
    %s1954 = scalar_lea.sflag [#allocation16], 1
    %1955 = vsyncpa %s1954, 1

</llo_original>
